<compile_context>
chip_gen: v7x
topology: tpu7x:2x2x1
jax: 0.10.0
libtpu: 0.0.40
codegen_flags: <defaults>
</compile_context>

<pallas_src>
import jax
import jax.numpy as jnp
from jax.experimental import pallas as pl
from jax.experimental.pallas import tpu as pltpu


def _round_up(x, m):
    return ((x + m - 1) // m) * m


def rnn_kernel(x_ref, lens_ref, wih_ref, whh_ref, b_ref, h_out_ref, h_scratch):
    """Time-chunked packed tanh-RNN step.

    x_ref    : (Tc, Bp, Ep) bf16  time-major embedded inputs for this chunk
    lens_ref : (Bp, 1)      int32 per-sequence valid lengths
    wih_ref  : (Ep, Hp)     bf16  input->hidden weight  (stored (in, out))
    whh_ref  : (Hp, Hp)     bf16  hidden->hidden weight (stored (in, out))
    b_ref    : (1, Hp)      f32   b_ih + b_hh
    h_out    : (Bp, Hp)     f32   final hidden state (written once, last step)
    h_scratch: (Bp, Hp)     f32   hidden state, persists across grid steps
    """
    k = pl.program_id(0)
    Tc, B, E = x_ref.shape
    H = whh_ref.shape[1]

    @pl.when(k == 0)
    def _():
        h_scratch[...] = jnp.zeros_like(h_scratch)

    # Chunk input projection hoisted out of the recurrence: one
    # (Tc*B, E) @ (E, H) bf16 MXU matmul with f32 accumulation; the bias
    # broadcast is materialized exactly once per chunk.
    xw = jnp.dot(x_ref[...].reshape(Tc * B, E), wih_ref[...],
                 preferred_element_type=jnp.float32)
    xw = (xw + b_ref[...]).reshape(Tc, B, H)

    lens = lens_ref[...]                    # (Bp, 1) int32
    whh = whh_ref[...]                      # hoisted load, bf16, reused Tc times
    t_base = k * Tc

    h = h_scratch[...]                      # f32
    for t in range(Tc):                     # Tc is small & static -> unrolled
        pre = xw[t] + jnp.dot(h.astype(whh.dtype), whh,
                              preferred_element_type=jnp.float32)
        h_new = jnp.tanh(pre)
        # pack_padded_sequence semantics: hidden freezes once t >= length[b];
        # the returned `hidden` is the state at each sequence's last valid step.
        h = jnp.where(t_base + t < lens, h_new, h)
    h_scratch[...] = h

    @pl.when(k == pl.num_programs(0) - 1)
    def _():
        h_out_ref[...] = h_scratch[...]     # lane-dense (Bp, Hp) store, once


def pad_and_cast_params(params, embedding_dim, hidden_dim):
    """One-time padding/casting of model params to hardware tiles (lane=128)."""
    E, H = embedding_dim, hidden_dim
    Ep, Hp = _round_up(E, 128), _round_up(H, 128)
    emb_p = jnp.pad(params["emb"], ((0, 0), (0, Ep - E))).astype(jnp.bfloat16)
    wih_p = jnp.pad(params["wih"], ((0, Ep - E), (0, Hp - H))).astype(jnp.bfloat16)
    whh_p = jnp.pad(params["whh"], ((0, Hp - H), (0, Hp - H))).astype(jnp.bfloat16)
    b_p = jnp.pad(params["b"], ((0, 0), (0, Hp - H)))          # stays f32
    return {"emb_p": emb_p, "wih_p": wih_p, "whh_p": whh_p, "b_p": b_p,
            "wfc": params["wfc"], "bfc": params["bfc"],
            "E": E, "H": H, "Ep": Ep, "Hp": Hp}


def rnn_forward(text, lengths, pparams, *, time_chunk=8):
    """Embedding gather (JAX) -> Pallas packed RNN -> Linear head (tiny, JAX)."""
    B, T = text.shape
    E, H, Ep, Hp = pparams["E"], pparams["H"], pparams["Ep"], pparams["Hp"]

    Tc = time_chunk
    Bp = _round_up(B, 16)                   # 16: bf16 sublane packing
    Tp = _round_up(T, Tc)

    # Pad the *token/length* arrays (cheap) instead of the activation slab,
    # then gather time-major directly from the pre-padded bf16 table.
    text_p = jnp.pad(text, ((0, Bp - B), (0, Tp - T)))          # pad token id 0
    lens2d = jnp.pad(lengths.astype(jnp.int32), (0, Bp - B)).reshape(Bp, 1)
    x = pparams["emb_p"][text_p.T]          # (Tp, Bp, Ep) bf16, single gather

    grid = (Tp // Tc,)
    cost = pl.CostEstimate(
        flops=2 * Tp * Bp * (Ep + Hp) * Hp,
        transcendentals=Tp * Bp * Hp,
        bytes_accessed=(x.size * 2 + (Ep * Hp + Hp * Hp) * 2
                        + Hp * 4 + Bp * Hp * 4),
    )

    h_final = pl.pallas_call(
        rnn_kernel,
        out_shape=jax.ShapeDtypeStruct((Bp, Hp), jnp.float32),
        grid=grid,
        in_specs=[
            pl.BlockSpec((Tc, Bp, Ep), lambda k: (k, 0, 0)),    # streamed chunk
            pl.BlockSpec((Bp, 1), lambda k: (0, 0)),            # lengths
            pl.BlockSpec((Ep, Hp), lambda k: (0, 0)),           # W_ih (resident)
            pl.BlockSpec((Hp, Hp), lambda k: (0, 0)),           # W_hh (resident)
            pl.BlockSpec((1, Hp), lambda k: (0, 0)),            # bias
        ],
        out_specs=pl.BlockSpec((Bp, Hp), lambda k: (0, 0)),     # accumulator
        scratch_shapes=[pltpu.VMEM((Bp, Hp), jnp.float32)],     # resident h
        compiler_params=pltpu.CompilerParams(
            dimension_semantics=("arbitrary",),
            vmem_limit_bytes=32 * 1024 * 1024),
        cost_estimate=cost,
    )(x, lens2d, pparams["wih_p"], pparams["whh_p"], pparams["b_p"])

    # Final Linear(hidden_dim, 1): an N=1 matmul is <1% MXU-utilized and would
    # force a lane-sparse store, so it stays as trivial host JAX.
    hidden = h_final[:B, :H]
    return hidden @ pparams["wfc"] + pparams["bfc"]


def rnn_reference(text, lengths, params):
    """Pure-JAX f32 reference (lax.scan) mirroring torch packed-RNN semantics."""
    x = params["emb"][text]                 # (B, T, E)
    B, T, _ = x.shape
    H = params["whh"].shape[0]
    lens = lengths.reshape(B, 1)

    def step(h, inp):
        x_t, t = inp
        h_new = jnp.tanh(x_t @ params["wih"] + h @ params["whh"] + params["b"])
        h = jnp.where(t < lens, h_new, h)
        return h, None

    xs = (jnp.transpose(x, (1, 0, 2)), jnp.arange(T))
    h, _ = jax.lax.scan(step, jnp.zeros((B, H), jnp.float32), xs)
    return h @ params["wfc"] + params["bfc"]


def init_params(key, vocab_size, embedding_dim, hidden_dim, output_dim):
    k_emb, k_wih, k_whh, k_bih, k_bhh, k_wfc, k_bfc = jax.random.split(key, 7)
    s = 1.0 / jnp.sqrt(hidden_dim)
    emb = jax.random.normal(k_emb, (vocab_size, embedding_dim), jnp.float32)
    wih = jax.random.uniform(k_wih, (embedding_dim, hidden_dim), jnp.float32, -s, s)
    whh = jax.random.uniform(k_whh, (hidden_dim, hidden_dim), jnp.float32, -s, s)
    b_ih = jax.random.uniform(k_bih, (1, hidden_dim), jnp.float32, -s, s)
    b_hh = jax.random.uniform(k_bhh, (1, hidden_dim), jnp.float32, -s, s)
    wfc = jax.random.uniform(k_wfc, (hidden_dim, output_dim), jnp.float32, -s, s)
    bfc = jax.random.uniform(k_bfc, (1, output_dim), jnp.float32, -s, s)
    return {"emb": emb, "wih": wih, "whh": whh, "b": b_ih + b_hh,
            "wfc": wfc, "bfc": bfc}


if __name__ == "__main__":
    vocab_size = 50          # stand-in for len(vocab)
    embedding_dim = 100
    hidden_dim = 256
    output_dim = 1
    B, T = 4, 16             # T=16 with Tc=8 exercises the 2-step time grid

    key = jax.random.PRNGKey(0)
    k_params, k_text, k_len = jax.random.split(key, 3)

    params = init_params(k_params, vocab_size, embedding_dim, hidden_dim, output_dim)
    pparams = pad_and_cast_params(params, embedding_dim, hidden_dim)

    text = jax.random.randint(k_text, (B, T), 0, vocab_size, dtype=jnp.int32)
    # `offsets` in the torch forward act as per-sequence lengths for packing.
    lengths = jax.random.randint(k_len, (B,), 1, T + 1, dtype=jnp.int32)

    out = rnn_forward(text, lengths, pparams)
    out = jax.block_until_ready(out)

    ref = rnn_reference(text, lengths, params)
    assert out.shape == (B, output_dim)
    # bf16 MXU feeds (f32 accumulation) -> relaxed tolerance vs. pure-f32 ref.
    assert jnp.allclose(out, ref, atol=5e-2, rtol=5e-2), (out, ref)

    print("KERNEL_OK")
</pallas_src>

<mosaic_0001>
module attributes {stable_mosaic.version = 11 : i64} {
  func.func @rnn_kernel(%arg0: i32, %arg1: memref<8x16x128xbf16, #tpu.memory_space<vmem>>, %arg2: memref<16x1xi32, #tpu.memory_space<vmem>>, %arg3: memref<128x256xbf16, #tpu.memory_space<vmem>>, %arg4: memref<256x256xbf16, #tpu.memory_space<vmem>>, %arg5: memref<1x256xf32, #tpu.memory_space<vmem>>, %arg6: memref<16x256xf32, #tpu.memory_space<vmem>>, %arg7: memref<16x256xf32, #tpu.memory_space<vmem>>) attributes {dimension_semantics = [#tpu.dimension_semantics<arbitrary>], iteration_bounds = array<i64: 2>, scalar_prefetch = 0 : i64, scratch_operands = 1 : i64, tpu.core_type = #tpu.core_type<tc>, window_params = [{transform_indices = @transform_0, window_bounds = array<i64: 8, 16, 128>}, {pipeline_mode = #tpu.pipeline_mode<synchronous>, transform_indices = @transform_1, window_bounds = array<i64: 16, 1>}, {pipeline_mode = #tpu.pipeline_mode<synchronous>, transform_indices = @transform_2, window_bounds = array<i64: 128, 256>}, {pipeline_mode = #tpu.pipeline_mode<synchronous>, transform_indices = @transform_3, window_bounds = array<i64: 256, 256>}, {pipeline_mode = #tpu.pipeline_mode<synchronous>, transform_indices = @transform_4, window_bounds = array<i64: 1, 256>}, {pipeline_mode = #tpu.pipeline_mode<synchronous>, transform_indices = @transform_5, window_bounds = array<i64: 16, 256>}]} {
    %c0_i32 = arith.constant 0 : i32
    %0 = arith.cmpi eq, %arg0, %c0_i32 : i32
    %1 = arith.extui %0 : i1 to i32
    %c0_i32_0 = arith.constant 0 : i32
    %2 = arith.cmpi ne, %1, %c0_i32_0 : i32
    scf.if %2 {
      %cst_26 = arith.constant 0.000000e+00 : f32
      %115 = vector.broadcast %cst_26 : f32 to vector<16x256xf32>
      %c0_27 = arith.constant 0 : index
      %c0_28 = arith.constant 0 : index
      %116 = vector.load %arg7[%c0_27, %c0_28] : memref<16x256xf32, #tpu.memory_space<vmem>>, vector<16x256xf32>
      tpu.vector_store %arg7[%c0_27, %c0_28], %115 {strides = array<i32>} : memref<16x256xf32, #tpu.memory_space<vmem>>, vector<16x256xf32>,
    } else {
    }
    %c0 = arith.constant 0 : index
    %c0_1 = arith.constant 0 : index
    %c0_2 = arith.constant 0 : index
    %3 = vector.load %arg1[%c0, %c0_1, %c0_2] : memref<8x16x128xbf16, #tpu.memory_space<vmem>>, vector<8x16x128xbf16>
    %4 = vector.shape_cast %3 : vector<8x16x128xbf16> to vector<128x128xbf16>
    %c0_3 = arith.constant 0 : index
    %c0_4 = arith.constant 0 : index
    %5 = vector.load %arg3[%c0_3, %c0_4] : memref<128x256xbf16, #tpu.memory_space<vmem>>, vector<128x256xbf16>
    %cst = arith.constant dense<0.000000e+00> : vector<128x256xf32>
    %6 = tpu.matmul %4, %5, %cst {dimension_numbers = #tpu.dot_dimension_numbers<[1], [0], [0], [1], [0, 0, 1, 1], [], []>} : vector<128x128xbf16>, vector<128x256xbf16>, vector<128x256xf32> -> vector<128x256xf32>
    %c0_5 = arith.constant 0 : index
    %c0_6 = arith.constant 0 : index
    %7 = vector.load %arg5[%c0_5, %c0_6] : memref<1x256xf32, #tpu.memory_space<vmem>>, vector<1x256xf32>
    %8 = vector.broadcast %7 : vector<1x256xf32> to vector<128x256xf32>
    %9 = arith.addf %6, %8 : vector<128x256xf32>
    %10 = vector.shape_cast %9 : vector<128x256xf32> to vector<8x16x256xf32>
    %c0_7 = arith.constant 0 : index
    %c0_8 = arith.constant 0 : index
    %11 = vector.load %arg2[%c0_7, %c0_8] : memref<16x1xi32, #tpu.memory_space<vmem>>, vector<16x1xi32>
    %c0_9 = arith.constant 0 : index
    %c0_10 = arith.constant 0 : index
    %12 = vector.load %arg4[%c0_9, %c0_10] : memref<256x256xbf16, #tpu.memory_space<vmem>>, vector<256x256xbf16>
    %c8_i32 = arith.constant 8 : i32
    %13 = arith.muli %arg0, %c8_i32 : i32
    %c0_11 = arith.constant 0 : index
    %c0_12 = arith.constant 0 : index
    %14 = vector.load %arg7[%c0_11, %c0_12] : memref<16x256xf32, #tpu.memory_space<vmem>>, vector<16x256xf32>
    %15 = vector.extract_strided_slice %10 {offsets = [0, 0, 0], sizes = [1, 16, 256], strides = [1, 1, 1]} : vector<8x16x256xf32> to vector<1x16x256xf32>
    %16 = vector.shape_cast %15 : vector<1x16x256xf32> to vector<16x256xf32>
    %17 = arith.truncf %14 : vector<16x256xf32> to vector<16x256xbf16>
    %cst_13 = arith.constant dense<0.000000e+00> : vector<16x256xf32>
    %18 = tpu.matmul %17, %12, %cst_13 {dimension_numbers = #tpu.dot_dimension_numbers<[1], [0], [0], [1], [0, 0, 1, 1], [], []>} : vector<16x256xbf16>, vector<256x256xbf16>, vector<16x256xf32> -> vector<16x256xf32>
    %19 = arith.addf %16, %18 : vector<16x256xf32>
    %20 = math.tanh %19 : vector<16x256xf32>
    %c0_i32_14 = arith.constant 0 : i32
    %21 = arith.addi %13, %c0_i32_14 : i32
    %22 = vector.broadcast %21 : i32 to vector<16x1xi32>
    %23 = arith.cmpi slt, %22, %11 : vector<16x1xi32>
    %24 = vector.shape_cast %23 : vector<16x1xi1> to vector<16x1xi1>
    %25 = vector.broadcast %24 : vector<16x1xi1> to vector<16x256xi1>
    %26 = arith.select %25, %20, %14 : vector<16x256xi1>, vector<16x256xf32>
    %27 = vector.extract_strided_slice %10 {offsets = [1, 0, 0], sizes = [1, 16, 256], strides = [1, 1, 1]} : vector<8x16x256xf32> to vector<1x16x256xf32>
    %28 = vector.shape_cast %27 : vector<1x16x256xf32> to vector<16x256xf32>
    %29 = arith.truncf %26 : vector<16x256xf32> to vector<16x256xbf16>
    %cst_15 = arith.constant dense<0.000000e+00> : vector<16x256xf32>
    %30 = tpu.matmul %29, %12, %cst_15 {dimension_numbers = #tpu.dot_dimension_numbers<[1], [0], [0], [1], [0, 0, 1, 1], [], []>} : vector<16x256xbf16>, vector<256x256xbf16>, vector<16x256xf32> -> vector<16x256xf32>
    %31 = arith.addf %28, %30 : vector<16x256xf32>
    %32 = math.tanh %31 : vector<16x256xf32>
    %c1_i32 = arith.constant 1 : i32
    %33 = arith.addi %13, %c1_i32 : i32
    %34 = vector.broadcast %33 : i32 to vector<16x1xi32>
    %35 = arith.cmpi slt, %34, %11 : vector<16x1xi32>
    %36 = vector.shape_cast %35 : vector<16x1xi1> to vector<16x1xi1>
    %37 = vector.broadcast %36 : vector<16x1xi1> to vector<16x256xi1>
    %38 = arith.select %37, %32, %26 : vector<16x256xi1>, vector<16x256xf32>
    %39 = vector.extract_strided_slice %10 {offsets = [2, 0, 0], sizes = [1, 16, 256], strides = [1, 1, 1]} : vector<8x16x256xf32> to vector<1x16x256xf32>
    %40 = vector.shape_cast %39 : vector<1x16x256xf32> to vector<16x256xf32>
    %41 = arith.truncf %38 : vector<16x256xf32> to vector<16x256xbf16>
    %cst_16 = arith.constant dense<0.000000e+00> : vector<16x256xf32>
    %42 = tpu.matmul %41, %12, %cst_16 {dimension_numbers = #tpu.dot_dimension_numbers<[1], [0], [0], [1], [0, 0, 1, 1], [], []>} : vector<16x256xbf16>, vector<256x256xbf16>, vector<16x256xf32> -> vector<16x256xf32>
    %43 = arith.addf %40, %42 : vector<16x256xf32>
    %44 = math.tanh %43 : vector<16x256xf32>
    %c2_i32 = arith.constant 2 : i32
    %45 = arith.addi %13, %c2_i32 : i32
    %46 = vector.broadcast %45 : i32 to vector<16x1xi32>
    %47 = arith.cmpi slt, %46, %11 : vector<16x1xi32>
    %48 = vector.shape_cast %47 : vector<16x1xi1> to vector<16x1xi1>
    %49 = vector.broadcast %48 : vector<16x1xi1> to vector<16x256xi1>
    %50 = arith.select %49, %44, %38 : vector<16x256xi1>, vector<16x256xf32>
    %51 = vector.extract_strided_slice %10 {offsets = [3, 0, 0], sizes = [1, 16, 256], strides = [1, 1, 1]} : vector<8x16x256xf32> to vector<1x16x256xf32>
    %52 = vector.shape_cast %51 : vector<1x16x256xf32> to vector<16x256xf32>
    %53 = arith.truncf %50 : vector<16x256xf32> to vector<16x256xbf16>
    %cst_17 = arith.constant dense<0.000000e+00> : vector<16x256xf32>
    %54 = tpu.matmul %53, %12, %cst_17 {dimension_numbers = #tpu.dot_dimension_numbers<[1], [0], [0], [1], [0, 0, 1, 1], [], []>} : vector<16x256xbf16>, vector<256x256xbf16>, vector<16x256xf32> -> vector<16x256xf32>
    %55 = arith.addf %52, %54 : vector<16x256xf32>
    %56 = math.tanh %55 : vector<16x256xf32>
    %c3_i32 = arith.constant 3 : i32
    %57 = arith.addi %13, %c3_i32 : i32
    %58 = vector.broadcast %57 : i32 to vector<16x1xi32>
    %59 = arith.cmpi slt, %58, %11 : vector<16x1xi32>
    %60 = vector.shape_cast %59 : vector<16x1xi1> to vector<16x1xi1>
    %61 = vector.broadcast %60 : vector<16x1xi1> to vector<16x256xi1>
    %62 = arith.select %61, %56, %50 : vector<16x256xi1>, vector<16x256xf32>
    %63 = vector.extract_strided_slice %10 {offsets = [4, 0, 0], sizes = [1, 16, 256], strides = [1, 1, 1]} : vector<8x16x256xf32> to vector<1x16x256xf32>
    %64 = vector.shape_cast %63 : vector<1x16x256xf32> to vector<16x256xf32>
    %65 = arith.truncf %62 : vector<16x256xf32> to vector<16x256xbf16>
    %cst_18 = arith.constant dense<0.000000e+00> : vector<16x256xf32>
    %66 = tpu.matmul %65, %12, %cst_18 {dimension_numbers = #tpu.dot_dimension_numbers<[1], [0], [0], [1], [0, 0, 1, 1], [], []>} : vector<16x256xbf16>, vector<256x256xbf16>, vector<16x256xf32> -> vector<16x256xf32>
    %67 = arith.addf %64, %66 : vector<16x256xf32>
    %68 = math.tanh %67 : vector<16x256xf32>
    %c4_i32 = arith.constant 4 : i32
    %69 = arith.addi %13, %c4_i32 : i32
    %70 = vector.broadcast %69 : i32 to vector<16x1xi32>
    %71 = arith.cmpi slt, %70, %11 : vector<16x1xi32>
    %72 = vector.shape_cast %71 : vector<16x1xi1> to vector<16x1xi1>
    %73 = vector.broadcast %72 : vector<16x1xi1> to vector<16x256xi1>
    %74 = arith.select %73, %68, %62 : vector<16x256xi1>, vector<16x256xf32>
    %75 = vector.extract_strided_slice %10 {offsets = [5, 0, 0], sizes = [1, 16, 256], strides = [1, 1, 1]} : vector<8x16x256xf32> to vector<1x16x256xf32>
    %76 = vector.shape_cast %75 : vector<1x16x256xf32> to vector<16x256xf32>
    %77 = arith.truncf %74 : vector<16x256xf32> to vector<16x256xbf16>
    %cst_19 = arith.constant dense<0.000000e+00> : vector<16x256xf32>
    %78 = tpu.matmul %77, %12, %cst_19 {dimension_numbers = #tpu.dot_dimension_numbers<[1], [0], [0], [1], [0, 0, 1, 1], [], []>} : vector<16x256xbf16>, vector<256x256xbf16>, vector<16x256xf32> -> vector<16x256xf32>
    %79 = arith.addf %76, %78 : vector<16x256xf32>
    %80 = math.tanh %79 : vector<16x256xf32>
    %c5_i32 = arith.constant 5 : i32
    %81 = arith.addi %13, %c5_i32 : i32
    %82 = vector.broadcast %81 : i32 to vector<16x1xi32>
    %83 = arith.cmpi slt, %82, %11 : vector<16x1xi32>
    %84 = vector.shape_cast %83 : vector<16x1xi1> to vector<16x1xi1>
    %85 = vector.broadcast %84 : vector<16x1xi1> to vector<16x256xi1>
    %86 = arith.select %85, %80, %74 : vector<16x256xi1>, vector<16x256xf32>
    %87 = vector.extract_strided_slice %10 {offsets = [6, 0, 0], sizes = [1, 16, 256], strides = [1, 1, 1]} : vector<8x16x256xf32> to vector<1x16x256xf32>
    %88 = vector.shape_cast %87 : vector<1x16x256xf32> to vector<16x256xf32>
    %89 = arith.truncf %86 : vector<16x256xf32> to vector<16x256xbf16>
    %cst_20 = arith.constant dense<0.000000e+00> : vector<16x256xf32>
    %90 = tpu.matmul %89, %12, %cst_20 {dimension_numbers = #tpu.dot_dimension_numbers<[1], [0], [0], [1], [0, 0, 1, 1], [], []>} : vector<16x256xbf16>, vector<256x256xbf16>, vector<16x256xf32> -> vector<16x256xf32>
    %91 = arith.addf %88, %90 : vector<16x256xf32>
    %92 = math.tanh %91 : vector<16x256xf32>
    %c6_i32 = arith.constant 6 : i32
    %93 = arith.addi %13, %c6_i32 : i32
    %94 = vector.broadcast %93 : i32 to vector<16x1xi32>
    %95 = arith.cmpi slt, %94, %11 : vector<16x1xi32>
    %96 = vector.shape_cast %95 : vector<16x1xi1> to vector<16x1xi1>
    %97 = vector.broadcast %96 : vector<16x1xi1> to vector<16x256xi1>
    %98 = arith.select %97, %92, %86 : vector<16x256xi1>, vector<16x256xf32>
    %99 = vector.extract_strided_slice %10 {offsets = [7, 0, 0], sizes = [1, 16, 256], strides = [1, 1, 1]} : vector<8x16x256xf32> to vector<1x16x256xf32>
    %100 = vector.shape_cast %99 : vector<1x16x256xf32> to vector<16x256xf32>
    %101 = arith.truncf %98 : vector<16x256xf32> to vector<16x256xbf16>
    %cst_21 = arith.constant dense<0.000000e+00> : vector<16x256xf32>
    %102 = tpu.matmul %101, %12, %cst_21 {dimension_numbers = #tpu.dot_dimension_numbers<[1], [0], [0], [1], [0, 0, 1, 1], [], []>} : vector<16x256xbf16>, vector<256x256xbf16>, vector<16x256xf32> -> vector<16x256xf32>
    %103 = arith.addf %100, %102 : vector<16x256xf32>
    %104 = math.tanh %103 : vector<16x256xf32>
    %c7_i32 = arith.constant 7 : i32
    %105 = arith.addi %13, %c7_i32 : i32
    %106 = vector.broadcast %105 : i32 to vector<16x1xi32>
    %107 = arith.cmpi slt, %106, %11 : vector<16x1xi32>
    %108 = vector.shape_cast %107 : vector<16x1xi1> to vector<16x1xi1>
    %109 = vector.broadcast %108 : vector<16x1xi1> to vector<16x256xi1>
    %110 = arith.select %109, %104, %98 : vector<16x256xi1>, vector<16x256xf32>
    %c0_22 = arith.constant 0 : index
    %c0_23 = arith.constant 0 : index
    %111 = vector.load %arg7[%c0_22, %c0_23] : memref<16x256xf32, #tpu.memory_space<vmem>>, vector<16x256xf32>
    tpu.vector_store %arg7[%c0_22, %c0_23], %110 {strides = array<i32>} : memref<16x256xf32, #tpu.memory_space<vmem>>, vector<16x256xf32>,
    %c1_i32_24 = arith.constant 1 : i32
    %112 = arith.cmpi eq, %arg0, %c1_i32_24 : i32
    %113 = arith.extui %112 : i1 to i32
    %c0_i32_25 = arith.constant 0 : i32
    %114 = arith.cmpi ne, %113, %c0_i32_25 : i32
    scf.if %114 {
      %c0_26 = arith.constant 0 : index
      %c0_27 = arith.constant 0 : index
      %115 = vector.load %arg7[%c0_26, %c0_27] : memref<16x256xf32, #tpu.memory_space<vmem>>, vector<16x256xf32>
      %c0_28 = arith.constant 0 : index
      %c0_29 = arith.constant 0 : index
      %116 = vector.load %arg6[%c0_28, %c0_29] : memref<16x256xf32, #tpu.memory_space<vmem>>, vector<16x256xf32>
      tpu.vector_store %arg6[%c0_28, %c0_29], %115 {strides = array<i32>} : memref<16x256xf32, #tpu.memory_space<vmem>>, vector<16x256xf32>,
    } else {
    }
    return
  }
  func.func @transform_0(%arg0: i32) -> (i32, i32, i32) {
    %c0_i32 = arith.constant 0 : i32
    %c0_i32_0 = arith.constant 0 : i32
    %c0_i32_1 = arith.constant 0 : i32
    return %arg0, %c0_i32, %c0_i32_0 : i32, i32, i32
  }
  func.func @transform_1(%arg0: i32) -> (i32, i32) {
    %c0_i32 = arith.constant 0 : i32
    %c0_i32_0 = arith.constant 0 : i32
    %c0_i32_1 = arith.constant 0 : i32
    return %c0_i32, %c0_i32_0 : i32, i32
  }
  func.func @transform_2(%arg0: i32) -> (i32, i32) {
    %c0_i32 = arith.constant 0 : i32
    %c0_i32_0 = arith.constant 0 : i32
    %c0_i32_1 = arith.constant 0 : i32
    return %c0_i32, %c0_i32_0 : i32, i32
  }
  func.func @transform_3(%arg0: i32) -> (i32, i32) {
    %c0_i32 = arith.constant 0 : i32
    %c0_i32_0 = arith.constant 0 : i32
    %c0_i32_1 = arith.constant 0 : i32
    return %c0_i32, %c0_i32_0 : i32, i32
  }
  func.func @transform_4(%arg0: i32) -> (i32, i32) {
    %c0_i32 = arith.constant 0 : i32
    %c0_i32_0 = arith.constant 0 : i32
    %c0_i32_1 = arith.constant 0 : i32
    return %c0_i32, %c0_i32_0 : i32, i32
  }
  func.func @transform_5(%arg0: i32) -> (i32, i32) {
    %c0_i32 = arith.constant 0 : i32
    %c0_i32_0 = arith.constant 0 : i32
    %c0_i32_1 = arith.constant 0 : i32
    return %c0_i32, %c0_i32_0 : i32, i32
  }
}

</mosaic_0001>

<llo_original>
// kernel: tpu_custom_call.1
$region0: #{tpu_custom_call.1}
  #allocation0 [shape = 'u32[]', space=smem, size = 0x4, offset = 0x4, fixed_abs, tag = 'smem constant byte address 0x4 - core index']
  #allocation1 [shape = 'u32[144,128]{1,0:T(1,128)}', space=vmem, size = 0x12000, scoped, tag = 'internal scratch']
  #allocation2 [shape = 'f32[16,256]{1,0:T(8,128)}', space=vmem, size = 0x4000, scoped, tag = 'scratch operand']
  %s0 = inlined_call_operand.hbm [shape: bf16[16,16,128], index: 0, kind: input, shape index: {}]
  %s1 = inlined_call_operand.vmem [shape: s32[16,1], index: 1, kind: input, shape index: {}]
  %s2 = inlined_call_operand.hbm [shape: bf16[128,256], index: 2, kind: input, shape index: {}]
  %s3 = inlined_call_operand.hbm [shape: bf16[256,256], index: 3, kind: input, shape index: {}]
  %s4 = inlined_call_operand.vmem [shape: f32[1,256], index: 4, kind: input, shape index: {}]
  %s5 = inlined_call_operand.hbm [shape: f32[16,256], index: 5, kind: output, shape index: {}]
  %s6 = sld [smem:[#allocation0]]
  $region73: #{tpu_custom_call.1} parent=0
    _
  %s8 = ssub.s32 1, %s6
  %s9 = scalar_select 0, %s8, %s6
  $region1: #{tpu_custom_call.1} parent=0
    #allocation3 [shape = 'u8[65536]{0}', space=vmem, size = 0x10000, scoped, tag = 'input window, operand 0']
    #allocation4 [shape = 's32[2]{0}', space=sflag, size = 0x8, scoped, tag = 'scoped memory for tpu_custom_call.1']
    #allocation5 [shape = 's32[2]{0}', space=sflag, size = 0x8, scoped, tag = 'scoped memory for tpu_custom_call.1']
    #allocation6 [shape = 'u8[65536]{0}', space=vmem, size = 0x10000, scoped, tag = 'input window, operand 2, single buffered']
    #allocation7 [shape = 's32[1]{0}', space=sflag, size = 0x4, scoped, tag = 'scoped memory for tpu_custom_call.1']
    #allocation8 [shape = 'u8[131072]{0}', space=vmem, size = 0x20000, scoped, tag = 'input window, operand 3, single buffered']
    #allocation9 [shape = 'u8[16384]{0}', space=vmem, size = 0x4000, scoped, tag = 'output window, operand 0, single buffered']
    %10 = vsyncpa [#allocation4], 0
    %s11 = scalar_lea.sflag [#allocation4], 1
    %12 = vsyncpa %s11, 0
    %13 = vsyncpa [#allocation7], 0
    %14 = vsyncpa [#allocation5], 0
    loop: start=0, step=1, limit=4
    $region2: #{tpu_custom_call.1} parent=1 // loop_pre_header
      _
    $region3: #{tpu_custom_call.1} parent=1 // loop_header
      %s16 = sphi 0, %s20
      %p17 = scmp.ge.s32.totalorder %s16, 4
      %s26 = sphi 0, %s28
      %s29 = sphi 0, %s26
      %s30 = sphi 0, %s29
      %s46 = sphi 0, %s30
      %s50 = sphi 0, %s50
      %s52 = sphi 0, %s50
      %s53 = sphi 0, %s52
      %s67 = sphi 0, %s53
      %s71 = sphi 0, %s71
      %s73 = sphi 0, %s71
      %s74 = sphi 0, %s73
      %s88 = sphi 0, %s74
      %s92 = sphi 0, %s92
      %s94 = sphi 0, %s92
      %s95 = sphi 0, %s94
      %s109 = sphi 0, %s95
      %s113 = sphi 0, %s113
      %s115 = sphi 0, %s113
      %s116 = sphi 0, %s115
      %s130 = sphi 0, %s116
      %s134 = sphi 0, %s134
      %s136 = sphi 0, %s134
      %s137 = sphi 0, %s136
      %s151 = sphi 0, %s137
    $region4: #{tpu_custom_call.1} parent=1 // loop_header_branch
      %19 = sbr.rel (%p17) target = $region8
    $region5: #{tpu_custom_call.1} parent=1 // loop_body
      %s21 = ssub.s32 %s16, 1
      %s22 = ssub.s32 %s16, 2
      %s23 = sadd.s32 %s16, 1
      %s24 = ssub.s32 %s16, %s23
      %p25 = scmp.eq.s32.totalorder %s24, 0
      %s27 = sadd.s32 %s26, 1
      %s28 = scalar_select %p25, %s26, %s27
      %p31 = pneg %p25
      %p32 = scmp.eq.s32.totalorder %s16, 1
      %p33 = por %p31, %p32
      %p34 = scmp.ne.s32.totalorder %s26, %s29
      %p35 = scmp.eq.s32.totalorder %s16, 0
      %p36 = por %p34, %p35
      %p37 = scmp.ne.s32.totalorder %s26, %s29
      %p38 = scmp.eq.s32.totalorder %s21, 1
      %p39 = por %p37, %p38
      %p40 = scmp.ne.s32.totalorder %s29, %s30
      %p41 = scmp.eq.s32.totalorder %s21, 0
      %p42 = por %p40, %p41
      %p43 = scmp.ne.s32.totalorder %s29, %s30
      %p44 = scmp.eq.s32.totalorder %s22, 1
      %p45 = por %p43, %p44
      %p47 = scmp.ne.s32.totalorder %s30, %s46
      %p48 = scmp.eq.s32.totalorder %s22, 0
      %p49 = por %p47, %p48
      %s51 = sadd.s32 %s50, 1
      %p54 = scmp.eq.s32.totalorder %s16, 1
      %p55 = scmp.ne.s32.totalorder %s50, %s52
      %p56 = scmp.eq.s32.totalorder %s16, 0
      %p57 = por %p55, %p56
      %p58 = scmp.ne.s32.totalorder %s50, %s52
      %p59 = scmp.eq.s32.totalorder %s21, 1
      %p60 = por %p58, %p59
      %p61 = scmp.ne.s32.totalorder %s52, %s53
      %p62 = scmp.eq.s32.totalorder %s21, 0
      %p63 = por %p61, %p62
      %p64 = scmp.ne.s32.totalorder %s52, %s53
      %p65 = scmp.eq.s32.totalorder %s22, 1
      %p66 = por %p64, %p65
      %p68 = scmp.ne.s32.totalorder %s53, %s67
      %p69 = scmp.eq.s32.totalorder %s22, 0
      %p70 = por %p68, %p69
      %s72 = sadd.s32 %s71, 1
      %p75 = scmp.eq.s32.totalorder %s16, 1
      %p76 = scmp.ne.s32.totalorder %s71, %s73
      %p77 = scmp.eq.s32.totalorder %s16, 0
      %p78 = por %p76, %p77
      %p79 = scmp.ne.s32.totalorder %s71, %s73
      %p80 = scmp.eq.s32.totalorder %s21, 1
      %p81 = por %p79, %p80
      %p82 = scmp.ne.s32.totalorder %s73, %s74
      %p83 = scmp.eq.s32.totalorder %s21, 0
      %p84 = por %p82, %p83
      %p85 = scmp.ne.s32.totalorder %s73, %s74
      %p86 = scmp.eq.s32.totalorder %s22, 1
      %p87 = por %p85, %p86
      %p89 = scmp.ne.s32.totalorder %s74, %s88
      %p90 = scmp.eq.s32.totalorder %s22, 0
      %p91 = por %p89, %p90
      %s93 = sadd.s32 %s92, 1
      %p96 = scmp.eq.s32.totalorder %s16, 1
      %p97 = scmp.ne.s32.totalorder %s92, %s94
      %p98 = scmp.eq.s32.totalorder %s16, 0
      %p99 = por %p97, %p98
      %p100 = scmp.ne.s32.totalorder %s92, %s94
      %p101 = scmp.eq.s32.totalorder %s21, 1
      %p102 = por %p100, %p101
      %p103 = scmp.ne.s32.totalorder %s94, %s95
      %p104 = scmp.eq.s32.totalorder %s21, 0
      %p105 = por %p103, %p104
      %p106 = scmp.ne.s32.totalorder %s94, %s95
      %p107 = scmp.eq.s32.totalorder %s22, 1
      %p108 = por %p106, %p107
      %p110 = scmp.ne.s32.totalorder %s95, %s109
      %p111 = scmp.eq.s32.totalorder %s22, 0
      %p112 = por %p110, %p111
      %s114 = sadd.s32 %s113, 1
      %p117 = scmp.eq.s32.totalorder %s16, 1
      %p118 = scmp.ne.s32.totalorder %s113, %s115
      %p119 = scmp.eq.s32.totalorder %s16, 0
      %p120 = por %p118, %p119
      %p121 = scmp.ne.s32.totalorder %s113, %s115
      %p122 = scmp.eq.s32.totalorder %s21, 1
      %p123 = por %p121, %p122
      %p124 = scmp.ne.s32.totalorder %s115, %s116
      %p125 = scmp.eq.s32.totalorder %s21, 0
      %p126 = por %p124, %p125
      %p127 = scmp.ne.s32.totalorder %s115, %s116
      %p128 = scmp.eq.s32.totalorder %s22, 1
      %p129 = por %p127, %p128
      %p131 = scmp.ne.s32.totalorder %s116, %s130
      %p132 = scmp.eq.s32.totalorder %s22, 0
      %p133 = por %p131, %p132
      %s135 = sadd.s32 %s134, 1
      %p138 = scmp.eq.s32.totalorder %s16, 1
      %p139 = scmp.ne.s32.totalorder %s134, %s136
      %p140 = scmp.eq.s32.totalorder %s16, 0
      %p141 = por %p139, %p140
      %p142 = scmp.ne.s32.totalorder %s134, %s136
      %p143 = scmp.eq.s32.totalorder %s21, 1
      %p144 = por %p142, %p143
      %p145 = scmp.ne.s32.totalorder %s136, %s137
      %p146 = scmp.eq.s32.totalorder %s21, 0
      %p147 = por %p145, %p146
      %p148 = scmp.ne.s32.totalorder %s136, %s137
      %p149 = scmp.eq.s32.totalorder %s22, 1
      %p150 = por %p148, %p149
      %p152 = scmp.ne.s32.totalorder %s137, %s151
      %p153 = scmp.eq.s32.totalorder %s22, 0
      %p154 = por %p152, %p153
      %p155 = scmp.le.s32.totalorder 1, %s16
      %p156 = scmp.lt.s32.totalorder %s16, 3
      %p157 = pnand %p155, %p156
      %p158 = pneg %p157
      // Predicated region
      $region9: #{tpu_custom_call.1} parent=5 // pred_check
        _
      $region10: #{tpu_custom_call.1} parent=5 // pred_check_branch
        %160 = sbr.rel (%p157) target = $region12
      $region11: #{tpu_custom_call.1} parent=5 // pred_region
        %s161 = ssub.s32 %s16, 1
        // Predicated region
        $region13: #{tpu_custom_call.1} parent=11 // pred_check
          %p162 = pneg %p63
        $region14: #{tpu_custom_call.1} parent=11 // pred_check_branch
          %164 = sbr.rel (%p162) target = $region16
        $region15: #{tpu_custom_call.1} parent=11 // pred_region
          _
        $region16: #{tpu_custom_call.1} parent=11 // pred_fallthru
          _
        // Predicated region
        $region17: #{tpu_custom_call.1} parent=11 // pred_check
          %p165 = pneg %p84
        $region18: #{tpu_custom_call.1} parent=11 // pred_check_branch
          %167 = sbr.rel (%p165) target = $region20
        $region19: #{tpu_custom_call.1} parent=11 // pred_region
          %s169 = ssub.s32 2048, 2048
          %170 = vsyncadd [#allocation7], %s169
          %s171 = sshll.u32 [#allocation6], 4
          %s172 = int_to_ptr.vmem [resolvable:$true] %s171
          %177 = dma.hbm_to_vmem [thread:$0]  %s2, 2048, %s172, [#allocation7], 128, 128, 8
        $region20: #{tpu_custom_call.1} parent=11 // pred_fallthru
          _
        // Predicated region
        $region21: #{tpu_custom_call.1} parent=11 // pred_check
          %p178 = pneg %p105
        $region22: #{tpu_custom_call.1} parent=11 // pred_check_branch
          %180 = sbr.rel (%p178) target = $region24
        $region23: #{tpu_custom_call.1} parent=11 // pred_region
          %s182 = ssub.s32 4096, 4096
          %183 = vsyncadd [#allocation7], %s182
          %s184 = sshll.u32 [#allocation8], 4
          %s185 = int_to_ptr.vmem [resolvable:$true] %s184
          %190 = dma.hbm_to_vmem [thread:$0]  %s3, 4096, %s185, [#allocation7], 128, 128, 8
        $region24: #{tpu_custom_call.1} parent=11 // pred_fallthru
          _
        // Predicated region
        $region25: #{tpu_custom_call.1} parent=11 // pred_check
          %p191 = pneg %p126
        $region26: #{tpu_custom_call.1} parent=11 // pred_check_branch
          %193 = sbr.rel (%p191) target = $region28
        $region27: #{tpu_custom_call.1} parent=11 // pred_region
          _
        $region28: #{tpu_custom_call.1} parent=11 // pred_fallthru
          _
      $region12: #{tpu_custom_call.1} parent=5 // pred_fallthru
        _
      %p194 = scmp.lt.s32.totalorder %s16, 2
      // Predicated region
      $region29: #{tpu_custom_call.1} parent=5 // pred_check
        %p195 = pneg %p194
      $region30: #{tpu_custom_call.1} parent=5 // pred_check_branch
        %197 = sbr.rel (%p195) target = $region32
      $region31: #{tpu_custom_call.1} parent=5 // pred_region
        // Predicated region
        $region33: #{tpu_custom_call.1} parent=31 // pred_check
          %p198 = pneg %p36
        $region34: #{tpu_custom_call.1} parent=31 // pred_check_branch
          %200 = sbr.rel (%p198) target = $region36
        $region35: #{tpu_custom_call.1} parent=31 // pred_region
          %s201 = sand.u32 %s26, 1
          %s202 = scalar_lea.sflag [#allocation4], %s201
          %s203 = sand.u32 %s26, 1
          %s204 = smul.addr %s203, 64
          %s205 = scalar_lea.vmem [#allocation3], %s204
          %s206 = smul.u32 8, %s16
          %s208 = ssub.s32 1024, 1024
          %209 = vsyncadd %s202, %s208
          %s210 = smul.addr %s206, 2
          %s211 = smul.addr %s210, 64
          %s212 = scalar_lea.hbm %s0, %s211
          %s213 = sshll.u32 %s205, 4
          %s214 = int_to_ptr.vmem [resolvable:$true] %s213
          %219 = dma.hbm_to_vmem [thread:$0]  %s212, 1024, %s214, %s202, 64, 64, 4
        $region36: #{tpu_custom_call.1} parent=31 // pred_fallthru
          _
      $region32: #{tpu_custom_call.1} parent=5 // pred_fallthru
        _
      %p220 = scmp.le.s32.totalorder 1, %s16
      %p221 = scmp.lt.s32.totalorder %s16, 3
      %p222 = pnand %p220, %p221
      %p223 = pneg %p222
      // Predicated region
      $region37: #{tpu_custom_call.1} parent=5 // pred_check
        _
      $region38: #{tpu_custom_call.1} parent=5 // pred_check_branch
        %225 = sbr.rel (%p222) target = $region40
      $region39: #{tpu_custom_call.1} parent=5 // pred_region
        %s226 = ssub.s32 %s16, 1
        %s227 = sand.u32 %s29, 1
        %s228 = scalar_lea.sflag [#allocation4], %s227
        %s229 = sand.u32 %s29, 1
        %s230 = smul.addr %s229, 64
        %s231 = scalar_lea.vmem [#allocation3], %s230
        // Predicated region
        $region41: #{tpu_custom_call.1} parent=39 // pred_check
          %p232 = pneg %p42
        $region42: #{tpu_custom_call.1} parent=39 // pred_check_branch
          %234 = sbr.rel (%p232) target = $region44
        $region43: #{tpu_custom_call.1} parent=39 // pred_region
          %235 = dma.done %s228, 1024
        $region44: #{tpu_custom_call.1} parent=39 // pred_fallthru
          _
        // Predicated region
        $region45: #{tpu_custom_call.1} parent=39 // pred_check
          %p236 = pneg %p84
        $region46: #{tpu_custom_call.1} parent=39 // pred_check_branch
          %238 = sbr.rel (%p236) target = $region48
        $region47: #{tpu_custom_call.1} parent=39 // pred_region
          %239 = dma.done [#allocation7], 2048
        $region48: #{tpu_custom_call.1} parent=39 // pred_fallthru
          _
        // Predicated region
        $region49: #{tpu_custom_call.1} parent=39 // pred_check
          %p240 = pneg %p105
        $region50: #{tpu_custom_call.1} parent=39 // pred_check_branch
          %242 = sbr.rel (%p240) target = $region52
        $region51: #{tpu_custom_call.1} parent=39 // pred_region
          %243 = dma.done [#allocation7], 4096
        $region52: #{tpu_custom_call.1} parent=39 // pred_fallthru
          _
        %s244 = sand.u32 %s29, 1
        %s245 = scalar_lea.sflag [#allocation4], %s244
        %s246 = sand.u32 %s29, 1
        %s247 = smul.addr %s246, 64
        %s248 = scalar_lea.vmem [#allocation3], %s247
        %p249 = pneg %p42
        %p250 = pneg %p39
        %p251 = pneg %p63
        %p252 = pneg %p60
        %p253 = pneg %p84
        %p254 = pneg %p81
        %p255 = pneg %p105
        %p256 = pneg %p102
        %p257 = pneg %p126
        %p258 = pneg %p123
        %p259 = pneg %p147
        %p260 = pneg %p144
        %s261 = smul.u32 8, %s21
        %p263 = scmp.eq.s32.totalorder %s21, 0
        // Predicated region
        $region53: #{tpu_custom_call.1} parent=39 // pred_check
          %p264 = pneg %p263
        $region54: #{tpu_custom_call.1} parent=39 // pred_check_branch
          %266 = sbr.rel (%p264) target = $region56
        $region55: #{tpu_custom_call.1} parent=39 // pred_region
          %267 = vst [vmem:[#allocation2] sm:$0xff] 0.0
          %268 = vst [vmem:[#allocation2 + $0x8] sm:$0xff] 0.0
          %269 = vst [vmem:[#allocation2 + $0x10] sm:$0xff] 0.0
          %270 = vst [vmem:[#allocation2 + $0x18] sm:$0xff] 0.0
        $region56: #{tpu_custom_call.1} parent=39 // pred_fallthru
          _
        %v271 = vld [vmem:[%s231] sm:$0xf]
        %v272 = vld [vmem:[%s231 + $0x4] sm:$0xf]
        %v273 = vld [vmem:[%s231 + $0x8] sm:$0xf]
        %v274 = vld [vmem:[%s231 + $0xc] sm:$0xf]
        %v275 = vld [vmem:[%s231 + $0x10] sm:$0xf]
        %v276 = vld [vmem:[%s231 + $0x14] sm:$0xf]
        %v277 = vld [vmem:[%s231 + $0x18] sm:$0xf]
        %v278 = vld [vmem:[%s231 + $0x1c] sm:$0xf]
        %v279 = vld [vmem:[%s231 + $0x20] sm:$0xf]
        %v280 = vld [vmem:[%s231 + $0x24] sm:$0xf]
        %v281 = vld [vmem:[%s231 + $0x28] sm:$0xf]
        %v282 = vld [vmem:[%s231 + $0x2c] sm:$0xf]
        %v283 = vld [vmem:[%s231 + $0x30] sm:$0xf]
        %v284 = vld [vmem:[%s231 + $0x34] sm:$0xf]
        %v285 = vld [vmem:[%s231 + $0x38] sm:$0xf]
        %v286 = vld [vmem:[%s231 + $0x3c] sm:$0xf]
        %v287 = vld [vmem:[#allocation6] sm:$0xff]
        %v288 = vld [vmem:[#allocation6 + $0x8] sm:$0xff]
        %v289 = vld [vmem:[#allocation6 + $0x10] sm:$0xff]
        %v290 = vld [vmem:[#allocation6 + $0x18] sm:$0xff]
        %v291 = vld [vmem:[#allocation6 + $0x20] sm:$0xff]
        %v292 = vld [vmem:[#allocation6 + $0x28] sm:$0xff]
        %v293 = vld [vmem:[#allocation6 + $0x30] sm:$0xff]
        %v294 = vld [vmem:[#allocation6 + $0x38] sm:$0xff]
        %v295 = vld [vmem:[#allocation6 + $0x40] sm:$0xff]
        %v296 = vld [vmem:[#allocation6 + $0x48] sm:$0xff]
        %v297 = vld [vmem:[#allocation6 + $0x50] sm:$0xff]
        %v298 = vld [vmem:[#allocation6 + $0x58] sm:$0xff]
        %v299 = vld [vmem:[#allocation6 + $0x60] sm:$0xff]
        %v300 = vld [vmem:[#allocation6 + $0x68] sm:$0xff]
        %v301 = vld [vmem:[#allocation6 + $0x70] sm:$0xff]
        %v302 = vld [vmem:[#allocation6 + $0x78] sm:$0xff]
        %v303 = vld [vmem:[%s4] sm:$0x3]
        %v305 = vlaneseq
        %v306 = vshrl.u32 %v305, 7
        %v307 = vsub.s32 0, %v306
        %v308 = vrot.slane %v303, %v307
        %v309 = vlaneseq
        %v310 = vshrl.u32 %v309, 7
        %v311 = vsub.s32 1, %v310
        %v312 = vrot.slane %v303, %v311
        %v331 = vunpack.c.l.b16 %v271
        %v332 = vunpack.c.l.b16 %v272
        %v333 = vunpack.c.l.b16 %v273
        %v334 = vunpack.c.l.b16 %v274
        %v335 = vunpack.c.l.b16 %v275
        %v336 = vunpack.c.l.b16 %v276
        %v337 = vunpack.c.l.b16 %v277
        %v338 = vunpack.c.l.b16 %v278
        %v339 = vunpack.c.l.b16 %v279
        %v340 = vunpack.c.l.b16 %v280
        %v341 = vunpack.c.l.b16 %v281
        %v342 = vunpack.c.l.b16 %v282
        %v343 = vunpack.c.l.b16 %v283
        %v344 = vunpack.c.l.b16 %v284
        %v345 = vunpack.c.l.b16 %v285
        %v346 = vunpack.c.l.b16 %v286
        %v347 = vpack.c.b16 %v332, %v331
        %v348 = vpack.c.b16 %v334, %v333
        %v349 = vpack.c.b16 %v336, %v335
        %v350 = vpack.c.b16 %v338, %v337
        %v351 = vpack.c.b16 %v340, %v339
        %v352 = vpack.c.b16 %v342, %v341
        %v353 = vpack.c.b16 %v344, %v343
        %v354 = vpack.c.b16 %v346, %v345
        %v379 = vunpack.c.l.b16 %v287
        %v380 = vunpack.c.h.b16 %v287
        %v381 = vunpack.c.l.b16 %v288
        %v382 = vunpack.c.h.b16 %v288
        %v383 = vunpack.c.l.b16 %v289
        %v384 = vunpack.c.h.b16 %v289
        %v385 = vunpack.c.l.b16 %v290
        %v386 = vunpack.c.h.b16 %v290
        %v387 = vunpack.c.l.b16 %v291
        %v388 = vunpack.c.h.b16 %v291
        %v389 = vunpack.c.l.b16 %v292
        %v390 = vunpack.c.h.b16 %v292
        %v391 = vunpack.c.l.b16 %v293
        %v392 = vunpack.c.h.b16 %v293
        %v393 = vunpack.c.l.b16 %v294
        %v394 = vunpack.c.h.b16 %v294
        %v395 = vunpack.c.l.b16 %v295
        %v396 = vunpack.c.h.b16 %v295
        %v397 = vunpack.c.l.b16 %v296
        %v398 = vunpack.c.h.b16 %v296
        %v399 = vunpack.c.l.b16 %v297
        %v400 = vunpack.c.h.b16 %v297
        %v401 = vunpack.c.l.b16 %v298
        %v402 = vunpack.c.h.b16 %v298
        %v403 = vunpack.c.l.b16 %v299
        %v404 = vunpack.c.h.b16 %v299
        %v405 = vunpack.c.l.b16 %v300
        %v406 = vunpack.c.h.b16 %v300
        %v407 = vunpack.c.l.b16 %v301
        %v408 = vunpack.c.h.b16 %v301
        %v409 = vunpack.c.l.b16 %v302
        %v410 = vunpack.c.h.b16 %v302
        %v411 = vpack.c.b16 %v381, %v379
        %v412 = vpack.c.b16 %v382, %v380
        %v413 = vpack.c.b16 %v385, %v383
        %v414 = vpack.c.b16 %v386, %v384
        %v415 = vpack.c.b16 %v389, %v387
        %v416 = vpack.c.b16 %v390, %v388
        %v417 = vpack.c.b16 %v393, %v391
        %v418 = vpack.c.b16 %v394, %v392
        %v419 = vpack.c.b16 %v397, %v395
        %v420 = vpack.c.b16 %v398, %v396
        %v421 = vpack.c.b16 %v401, %v399
        %v422 = vpack.c.b16 %v402, %v400
        %v423 = vpack.c.b16 %v405, %v403
        %v424 = vpack.c.b16 %v406, %v404
        %v425 = vpack.c.b16 %v409, %v407
        %v426 = vpack.c.b16 %v410, %v408
        %443 = vmatprep.subr.bf16.mxu0 %v412
        %444 = vmatpush1.bf16.msra.mxu0 %v411
        %445 = vmatprep.subr.bf16.mxu0 %v414
        %446 = vmatpush1.bf16.msra.mxu0 %v413
        %447 = vmatprep.subr.bf16.mxu0 %v416
        %448 = vmatpush1.bf16.msra.mxu0 %v415
        %449 = vmatprep.subr.bf16.mxu0 %v418
        %450 = vmatpush1.bf16.msra.mxu0 %v417
        %451 = vmatprep.subr.bf16.mxu0 %v420
        %452 = vmatpush1.bf16.msra.mxu0 %v419
        %453 = vmatprep.subr.bf16.mxu0 %v422
        %454 = vmatpush1.bf16.msra.mxu0 %v421
        %455 = vmatprep.subr.bf16.mxu0 %v424
        %456 = vmatpush1.bf16.msra.mxu0 %v423
        %457 = vmatprep.subr.bf16.mxu0 %v426
        %458 = vmatpush1.bf16.msra.mxu0 %v425
        %459 = vmatprep.subr.bf16.mxu0 0
        %460 = vmatpush1.bf16.msra.mxu0 0
        %461 = vmatprep.subr.bf16.mxu0 0
        %462 = vmatpush1.bf16.msra.mxu0 0
        %463 = vmatprep.subr.bf16.mxu0 0
        %464 = vmatpush1.bf16.msra.mxu0 0
        %465 = vmatprep.subr.bf16.mxu0 0
        %466 = vmatpush1.bf16.msra.mxu0 0
        %467 = vmatprep.subr.bf16.mxu0 0
        %468 = vmatpush1.bf16.msra.mxu0 0
        %469 = vmatprep.subr.bf16.mxu0 0
        %470 = vmatpush1.bf16.msra.mxu0 0
        %471 = vmatprep.subr.bf16.mxu0 0
        %472 = vmatpush1.bf16.msra.mxu0 0
        %473 = vmatprep.subr.bf16.mxu0 0
        %474 = vmatpush1.bf16.msra.mxu0 0
        %475 = vmatprep.mubr.bf16.mxu0 0
        %476 = vmatmul.mubr.bf16.gmra.mrb[0].mxu0 %v347
        %v477 = vpop.f32.mrb[0].mxu0
        %v478 = vadd.f32 %v308, %v477
        %v479 = vpop.f32.mrb[0].mxu0
        %v480 = vadd.f32 %v312, %v479
        %v481 = vpop.f32.mrb[0].mxu0
        %v482 = vadd.f32 %v308, %v481
        %v483 = vpop.f32.mrb[0].mxu0
        %v484 = vadd.f32 %v312, %v483
        %485 = vmatprep.mubr.bf16.mxu0 0
        %486 = vmatmul.mubr.bf16.gmra.mrb[0].mxu0 %v348
        %v487 = vpop.f32.mrb[0].mxu0
        %v488 = vadd.f32 %v308, %v487
        %v489 = vpop.f32.mrb[0].mxu0
        %v490 = vadd.f32 %v312, %v489
        %v491 = vpop.f32.mrb[0].mxu0
        %v492 = vadd.f32 %v308, %v491
        %v493 = vpop.f32.mrb[0].mxu0
        %v494 = vadd.f32 %v312, %v493
        %495 = vmatprep.mubr.bf16.mxu0 0
        %496 = vmatmul.mubr.bf16.gmra.mrb[0].mxu0 %v349
        %v497 = vpop.f32.mrb[0].mxu0
        %v498 = vadd.f32 %v308, %v497
        %v499 = vpop.f32.mrb[0].mxu0
        %v500 = vadd.f32 %v312, %v499
        %v501 = vpop.f32.mrb[0].mxu0
        %v502 = vadd.f32 %v308, %v501
        %v503 = vpop.f32.mrb[0].mxu0
        %v504 = vadd.f32 %v312, %v503
        %505 = vmatprep.mubr.bf16.mxu0 0
        %506 = vmatmul.mubr.bf16.gmra.mrb[0].mxu0 %v350
        %v507 = vpop.f32.mrb[0].mxu0
        %v508 = vadd.f32 %v308, %v507
        %v509 = vpop.f32.mrb[0].mxu0
        %v510 = vadd.f32 %v312, %v509
        %v511 = vpop.f32.mrb[0].mxu0
        %v512 = vadd.f32 %v308, %v511
        %v513 = vpop.f32.mrb[0].mxu0
        %v514 = vadd.f32 %v312, %v513
        %515 = vmatprep.mubr.bf16.mxu0 0
        %516 = vmatmul.mubr.bf16.gmra.mrb[0].mxu0 %v351
        %v517 = vpop.f32.mrb[0].mxu0
        %v518 = vadd.f32 %v308, %v517
        %v519 = vpop.f32.mrb[0].mxu0
        %v520 = vadd.f32 %v312, %v519
        %v521 = vpop.f32.mrb[0].mxu0
        %v522 = vadd.f32 %v308, %v521
        %v523 = vpop.f32.mrb[0].mxu0
        %v524 = vadd.f32 %v312, %v523
        %525 = vmatprep.mubr.bf16.mxu0 0
        %526 = vmatmul.mubr.bf16.gmra.mrb[0].mxu0 %v352
        %v527 = vpop.f32.mrb[0].mxu0
        %v528 = vadd.f32 %v308, %v527
        %v529 = vpop.f32.mrb[0].mxu0
        %v530 = vadd.f32 %v312, %v529
        %v531 = vpop.f32.mrb[0].mxu0
        %v532 = vadd.f32 %v308, %v531
        %v533 = vpop.f32.mrb[0].mxu0
        %v534 = vadd.f32 %v312, %v533
        %535 = vmatprep.mubr.bf16.mxu0 0
        %536 = vmatmul.mubr.bf16.gmra.mrb[0].mxu0 %v353
        %v537 = vpop.f32.mrb[0].mxu0
        %v538 = vadd.f32 %v308, %v537
        %v539 = vpop.f32.mrb[0].mxu0
        %v540 = vadd.f32 %v312, %v539
        %v541 = vpop.f32.mrb[0].mxu0
        %v542 = vadd.f32 %v308, %v541
        %v543 = vpop.f32.mrb[0].mxu0
        %v544 = vadd.f32 %v312, %v543
        %545 = vmatprep.mubr.bf16.mxu0 0
        %546 = vmatmul.mubr.bf16.gmra.mrb[0].mxu0 %v354
        %v547 = vpop.f32.mrb[0].mxu0
        %v548 = vadd.f32 %v308, %v547
        %v549 = vpop.f32.mrb[0].mxu0
        %v550 = vadd.f32 %v312, %v549
        %v551 = vpop.f32.mrb[0].mxu0
        %v552 = vadd.f32 %v308, %v551
        %v553 = vpop.f32.mrb[0].mxu0
        %v554 = vadd.f32 %v312, %v553
        %555 = vdwg.mxu0
        %v556 = vld [vmem:[%s1] sm:$0xff]
        %v557 = vld [vmem:[%s1 + $0x8] sm:$0xff]
        %v558 = vld [vmem:[#allocation8] sm:$0xff]
        %v559 = vld [vmem:[#allocation8 + $0x8] sm:$0xff]
        %v560 = vld [vmem:[#allocation8 + $0x10] sm:$0xff]
        %v561 = vld [vmem:[#allocation8 + $0x18] sm:$0xff]
        %v562 = vld [vmem:[#allocation8 + $0x20] sm:$0xff]
        %v563 = vld [vmem:[#allocation8 + $0x28] sm:$0xff]
        %v564 = vld [vmem:[#allocation8 + $0x30] sm:$0xff]
        %v565 = vld [vmem:[#allocation8 + $0x38] sm:$0xff]
        %v566 = vld [vmem:[#allocation8 + $0x40] sm:$0xff]
        %v567 = vld [vmem:[#allocation8 + $0x48] sm:$0xff]
        %v568 = vld [vmem:[#allocation8 + $0x50] sm:$0xff]
        %v569 = vld [vmem:[#allocation8 + $0x58] sm:$0xff]
        %v570 = vld [vmem:[#allocation8 + $0x60] sm:$0xff]
        %v571 = vld [vmem:[#allocation8 + $0x68] sm:$0xff]
        %v572 = vld [vmem:[#allocation8 + $0x70] sm:$0xff]
        %v573 = vld [vmem:[#allocation8 + $0x78] sm:$0xff]
        %v574 = vld [vmem:[#allocation8 + $0x80] sm:$0xff]
        %v575 = vld [vmem:[#allocation8 + $0x88] sm:$0xff]
        %v576 = vld [vmem:[#allocation8 + $0x90] sm:$0xff]
        %v577 = vld [vmem:[#allocation8 + $0x98] sm:$0xff]
        %v578 = vld [vmem:[#allocation8 + $0xa0] sm:$0xff]
        %v579 = vld [vmem:[#allocation8 + $0xa8] sm:$0xff]
        %v580 = vld [vmem:[#allocation8 + $0xb0] sm:$0xff]
        %v581 = vld [vmem:[#allocation8 + $0xb8] sm:$0xff]
        %v582 = vld [vmem:[#allocation8 + $0xc0] sm:$0xff]
        %v583 = vld [vmem:[#allocation8 + $0xc8] sm:$0xff]
        %v584 = vld [vmem:[#allocation8 + $0xd0] sm:$0xff]
        %v585 = vld [vmem:[#allocation8 + $0xd8] sm:$0xff]
        %v586 = vld [vmem:[#allocation8 + $0xe0] sm:$0xff]
        %v587 = vld [vmem:[#allocation8 + $0xe8] sm:$0xff]
        %v588 = vld [vmem:[#allocation8 + $0xf0] sm:$0xff]
        %v589 = vld [vmem:[#allocation8 + $0xf8] sm:$0xff]
        %s590 = smul.u32 %s21, 8
        %v591 = vld [vmem:[#allocation2] sm:$0xff]
        %v592 = vld [vmem:[#allocation2 + $0x8] sm:$0xff]
        %v593 = vld [vmem:[#allocation2 + $0x10] sm:$0xff]
        %v594 = vld [vmem:[#allocation2 + $0x18] sm:$0xff]
        %v595 = vpack.c.bf16 %v593, %v591
        %v596 = vpack.c.bf16 %v594, %v592
        %v629 = vunpack.c.l.b16 %v558
        %v630 = vunpack.c.h.b16 %v558
        %v631 = vunpack.c.l.b16 %v559
        %v632 = vunpack.c.h.b16 %v559
        %v633 = vunpack.c.l.b16 %v560
        %v634 = vunpack.c.h.b16 %v560
        %v635 = vunpack.c.l.b16 %v561
        %v636 = vunpack.c.h.b16 %v561
        %v637 = vunpack.c.l.b16 %v562
        %v638 = vunpack.c.h.b16 %v562
        %v639 = vunpack.c.l.b16 %v563
        %v640 = vunpack.c.h.b16 %v563
        %v641 = vunpack.c.l.b16 %v564
        %v642 = vunpack.c.h.b16 %v564
        %v643 = vunpack.c.l.b16 %v565
        %v644 = vunpack.c.h.b16 %v565
        %v645 = vunpack.c.l.b16 %v566
        %v646 = vunpack.c.h.b16 %v566
        %v647 = vunpack.c.l.b16 %v567
        %v648 = vunpack.c.h.b16 %v567
        %v649 = vunpack.c.l.b16 %v568
        %v650 = vunpack.c.h.b16 %v568
        %v651 = vunpack.c.l.b16 %v569
        %v652 = vunpack.c.h.b16 %v569
        %v653 = vunpack.c.l.b16 %v570
        %v654 = vunpack.c.h.b16 %v570
        %v655 = vunpack.c.l.b16 %v571
        %v656 = vunpack.c.h.b16 %v571
        %v657 = vunpack.c.l.b16 %v572
        %v658 = vunpack.c.h.b16 %v572
        %v659 = vunpack.c.l.b16 %v573
        %v660 = vunpack.c.h.b16 %v573
        %v661 = vunpack.c.l.b16 %v574
        %v662 = vunpack.c.h.b16 %v574
        %v663 = vunpack.c.l.b16 %v575
        %v664 = vunpack.c.h.b16 %v575
        %v665 = vunpack.c.l.b16 %v576
        %v666 = vunpack.c.h.b16 %v576
        %v667 = vunpack.c.l.b16 %v577
        %v668 = vunpack.c.h.b16 %v577
        %v669 = vunpack.c.l.b16 %v578
        %v670 = vunpack.c.h.b16 %v578
        %v671 = vunpack.c.l.b16 %v579
        %v672 = vunpack.c.h.b16 %v579
        %v673 = vunpack.c.l.b16 %v580
        %v674 = vunpack.c.h.b16 %v580
        %v675 = vunpack.c.l.b16 %v581
        %v676 = vunpack.c.h.b16 %v581
        %v677 = vunpack.c.l.b16 %v582
        %v678 = vunpack.c.h.b16 %v582
        %v679 = vunpack.c.l.b16 %v583
        %v680 = vunpack.c.h.b16 %v583
        %v681 = vunpack.c.l.b16 %v584
        %v682 = vunpack.c.h.b16 %v584
        %v683 = vunpack.c.l.b16 %v585
        %v684 = vunpack.c.h.b16 %v585
        %v685 = vunpack.c.l.b16 %v586
        %v686 = vunpack.c.h.b16 %v586
        %v687 = vunpack.c.l.b16 %v587
        %v688 = vunpack.c.h.b16 %v587
        %v689 = vunpack.c.l.b16 %v588
        %v690 = vunpack.c.h.b16 %v588
        %v691 = vunpack.c.l.b16 %v589
        %v692 = vunpack.c.h.b16 %v589
        %v693 = vpack.c.b16 %v631, %v629
        %v694 = vpack.c.b16 %v632, %v630
        %v695 = vpack.c.b16 %v635, %v633
        %v696 = vpack.c.b16 %v636, %v634
        %v697 = vpack.c.b16 %v639, %v637
        %v698 = vpack.c.b16 %v640, %v638
        %v699 = vpack.c.b16 %v643, %v641
        %v700 = vpack.c.b16 %v644, %v642
        %v701 = vpack.c.b16 %v647, %v645
        %v702 = vpack.c.b16 %v648, %v646
        %v703 = vpack.c.b16 %v651, %v649
        %v704 = vpack.c.b16 %v652, %v650
        %v705 = vpack.c.b16 %v655, %v653
        %v706 = vpack.c.b16 %v656, %v654
        %v707 = vpack.c.b16 %v659, %v657
        %v708 = vpack.c.b16 %v660, %v658
        %v709 = vpack.c.b16 %v663, %v661
        %v710 = vpack.c.b16 %v664, %v662
        %v711 = vpack.c.b16 %v667, %v665
        %v712 = vpack.c.b16 %v668, %v666
        %v713 = vpack.c.b16 %v671, %v669
        %v714 = vpack.c.b16 %v672, %v670
        %v715 = vpack.c.b16 %v675, %v673
        %v716 = vpack.c.b16 %v676, %v674
        %v717 = vpack.c.b16 %v679, %v677
        %v718 = vpack.c.b16 %v680, %v678
        %v719 = vpack.c.b16 %v683, %v681
        %v720 = vpack.c.b16 %v684, %v682
        %v721 = vpack.c.b16 %v687, %v685
        %v722 = vpack.c.b16 %v688, %v686
        %v723 = vpack.c.b16 %v691, %v689
        %v724 = vpack.c.b16 %v692, %v690
        %757 = vmatprep.subr.bf16.mxu0 %v694
        %758 = vmatpush1.bf16.msra.mxu0 %v693
        %759 = vmatprep.subr.bf16.mxu0 %v696
        %760 = vmatpush1.bf16.msra.mxu0 %v695
        %761 = vmatprep.subr.bf16.mxu0 %v698
        %762 = vmatpush1.bf16.msra.mxu0 %v697
        %763 = vmatprep.subr.bf16.mxu0 %v700
        %764 = vmatpush1.bf16.msra.mxu0 %v699
        %765 = vmatprep.subr.bf16.mxu0 %v702
        %766 = vmatpush1.bf16.msra.mxu0 %v701
        %767 = vmatprep.subr.bf16.mxu0 %v704
        %768 = vmatpush1.bf16.msra.mxu0 %v703
        %769 = vmatprep.subr.bf16.mxu0 %v706
        %770 = vmatpush1.bf16.msra.mxu0 %v705
        %771 = vmatprep.subr.bf16.mxu0 %v708
        %772 = vmatpush1.bf16.msra.mxu0 %v707
        %773 = vmatprep.subr.bf16.mxu0 %v710
        %774 = vmatpush1.bf16.msra.mxu0 %v709
        %775 = vmatprep.subr.bf16.mxu0 %v712
        %776 = vmatpush1.bf16.msra.mxu0 %v711
        %777 = vmatprep.subr.bf16.mxu0 %v714
        %778 = vmatpush1.bf16.msra.mxu0 %v713
        %779 = vmatprep.subr.bf16.mxu0 %v716
        %780 = vmatpush1.bf16.msra.mxu0 %v715
        %781 = vmatprep.subr.bf16.mxu0 %v718
        %782 = vmatpush1.bf16.msra.mxu0 %v717
        %783 = vmatprep.subr.bf16.mxu0 %v720
        %784 = vmatpush1.bf16.msra.mxu0 %v719
        %785 = vmatprep.subr.bf16.mxu0 %v722
        %786 = vmatpush1.bf16.msra.mxu0 %v721
        %787 = vmatprep.subr.bf16.mxu0 %v724
        %788 = vmatpush1.bf16.msra.mxu0 %v723
        %789 = vmatprep.mubr.bf16.mxu0 %v596
        %790 = vmatmul.mubr.bf16.gmra.mrb[0].mxu0 %v595
        %v791 = vpop.f32.mrb[0].mxu0
        %v792 = vadd.f32 0.0, %v791
        %v793 = vpop.f32.mrb[0].mxu0
        %v794 = vadd.f32 0.0, %v793
        %v795 = vpop.f32.mrb[0].mxu0
        %v796 = vadd.f32 0.0, %v795
        %v797 = vpop.f32.mrb[0].mxu0
        %v798 = vadd.f32 0.0, %v797
        %799 = vdwg.mxu0
        %v800 = vadd.f32 %v478, %v792
        %v801 = vadd.f32 %v480, %v794
        %v802 = vadd.f32 %v482, %v796
        %v803 = vadd.f32 %v484, %v798
        %v804 = vtanh.pop %v800
        %v805 = vtanh.pop %v801
        %v806 = vtanh.pop %v802
        %v807 = vtanh.pop %v803
        %v808 = vstv %s590
        %vm809 = vcmp.lt.s32.totalorder %v808, %v556
        %vm810 = vcmp.lt.s32.totalorder %v808, %v557
        %v811 = vsel %vm809, 1, 0
        %v812 = vsel %vm810, 1, 0
        %813 = vset.pattern.permute.xlu0 0
        %814 = vperm.xlu0 %813, %v811
        %v815 = vpop.permute.xlu0 %814
        %816 = vset.pattern.permute.xlu0 0
        %817 = vperm.xlu0 %816, %v812
        %v818 = vpop.permute.xlu0 %817
        %vm819 = vcmp.eq.s32.totalorder %v815, 1
        %vm820 = vcmp.eq.s32.totalorder %v818, 1
        %v821 = vsel %vm819, %v804, %v591
        %v822 = vsel %vm819, %v805, %v592
        %v823 = vsel %vm820, %v806, %v593
        %v824 = vsel %vm820, %v807, %v594
        %v825 = vpack.c.bf16 %v823, %v821
        %v826 = vpack.c.bf16 %v824, %v822
        %827 = vmatprep.subr.bf16.mxu0 %v694
        %828 = vmatpush1.bf16.msra.mxu0 %v693
        %829 = vmatprep.subr.bf16.mxu0 %v696
        %830 = vmatpush1.bf16.msra.mxu0 %v695
        %831 = vmatprep.subr.bf16.mxu0 %v698
        %832 = vmatpush1.bf16.msra.mxu0 %v697
        %833 = vmatprep.subr.bf16.mxu0 %v700
        %834 = vmatpush1.bf16.msra.mxu0 %v699
        %835 = vmatprep.subr.bf16.mxu0 %v702
        %836 = vmatpush1.bf16.msra.mxu0 %v701
        %837 = vmatprep.subr.bf16.mxu0 %v704
        %838 = vmatpush1.bf16.msra.mxu0 %v703
        %839 = vmatprep.subr.bf16.mxu0 %v706
        %840 = vmatpush1.bf16.msra.mxu0 %v705
        %841 = vmatprep.subr.bf16.mxu0 %v708
        %842 = vmatpush1.bf16.msra.mxu0 %v707
        %843 = vmatprep.subr.bf16.mxu0 %v710
        %844 = vmatpush1.bf16.msra.mxu0 %v709
        %845 = vmatprep.subr.bf16.mxu0 %v712
        %846 = vmatpush1.bf16.msra.mxu0 %v711
        %847 = vmatprep.subr.bf16.mxu0 %v714
        %848 = vmatpush1.bf16.msra.mxu0 %v713
        %849 = vmatprep.subr.bf16.mxu0 %v716
        %850 = vmatpush1.bf16.msra.mxu0 %v715
        %851 = vmatprep.subr.bf16.mxu0 %v718
        %852 = vmatpush1.bf16.msra.mxu0 %v717
        %853 = vmatprep.subr.bf16.mxu0 %v720
        %854 = vmatpush1.bf16.msra.mxu0 %v719
        %855 = vmatprep.subr.bf16.mxu0 %v722
        %856 = vmatpush1.bf16.msra.mxu0 %v721
        %857 = vmatprep.subr.bf16.mxu0 %v724
        %858 = vmatpush1.bf16.msra.mxu0 %v723
        %859 = vmatprep.mubr.bf16.mxu0 %v826
        %860 = vmatmul.mubr.bf16.gmra.mrb[0].mxu0 %v825
        %v861 = vpop.f32.mrb[0].mxu0
        %v862 = vadd.f32 0.0, %v861
        %v863 = vpop.f32.mrb[0].mxu0
        %v864 = vadd.f32 0.0, %v863
        %v865 = vpop.f32.mrb[0].mxu0
        %v866 = vadd.f32 0.0, %v865
        %v867 = vpop.f32.mrb[0].mxu0
        %v868 = vadd.f32 0.0, %v867
        %869 = vdwg.mxu0
        %v870 = vadd.f32 %v488, %v862
        %v871 = vadd.f32 %v490, %v864
        %v872 = vadd.f32 %v492, %v866
        %v873 = vadd.f32 %v494, %v868
        %v874 = vtanh.pop %v870
        %v875 = vtanh.pop %v871
        %v876 = vtanh.pop %v872
        %v877 = vtanh.pop %v873
        %s878 = sadd.s32 %s590, 1
        %v879 = vstv %s878
        %vm880 = vcmp.lt.s32.totalorder %v879, %v556
        %vm881 = vcmp.lt.s32.totalorder %v879, %v557
        %v882 = vsel %vm880, 1, 0
        %v883 = vsel %vm881, 1, 0
        %884 = vset.pattern.permute.xlu0 0
        %885 = vperm.xlu0 %884, %v882
        %v886 = vpop.permute.xlu0 %885
        %887 = vset.pattern.permute.xlu0 0
        %888 = vperm.xlu0 %887, %v883
        %v889 = vpop.permute.xlu0 %888
        %vm890 = vcmp.eq.s32.totalorder %v886, 1
        %vm891 = vcmp.eq.s32.totalorder %v889, 1
        %v892 = vsel %vm890, %v874, %v821
        %v893 = vsel %vm890, %v875, %v822
        %v894 = vsel %vm891, %v876, %v823
        %v895 = vsel %vm891, %v877, %v824
        %v896 = vpack.c.bf16 %v894, %v892
        %v897 = vpack.c.bf16 %v895, %v893
        %898 = vmatprep.subr.bf16.mxu0 %v694
        %899 = vmatpush1.bf16.msra.mxu0 %v693
        %900 = vmatprep.subr.bf16.mxu0 %v696
        %901 = vmatpush1.bf16.msra.mxu0 %v695
        %902 = vmatprep.subr.bf16.mxu0 %v698
        %903 = vmatpush1.bf16.msra.mxu0 %v697
        %904 = vmatprep.subr.bf16.mxu0 %v700
        %905 = vmatpush1.bf16.msra.mxu0 %v699
        %906 = vmatprep.subr.bf16.mxu0 %v702
        %907 = vmatpush1.bf16.msra.mxu0 %v701
        %908 = vmatprep.subr.bf16.mxu0 %v704
        %909 = vmatpush1.bf16.msra.mxu0 %v703
        %910 = vmatprep.subr.bf16.mxu0 %v706
        %911 = vmatpush1.bf16.msra.mxu0 %v705
        %912 = vmatprep.subr.bf16.mxu0 %v708
        %913 = vmatpush1.bf16.msra.mxu0 %v707
        %914 = vmatprep.subr.bf16.mxu0 %v710
        %915 = vmatpush1.bf16.msra.mxu0 %v709
        %916 = vmatprep.subr.bf16.mxu0 %v712
        %917 = vmatpush1.bf16.msra.mxu0 %v711
        %918 = vmatprep.subr.bf16.mxu0 %v714
        %919 = vmatpush1.bf16.msra.mxu0 %v713
        %920 = vmatprep.subr.bf16.mxu0 %v716
        %921 = vmatpush1.bf16.msra.mxu0 %v715
        %922 = vmatprep.subr.bf16.mxu0 %v718
        %923 = vmatpush1.bf16.msra.mxu0 %v717
        %924 = vmatprep.subr.bf16.mxu0 %v720
        %925 = vmatpush1.bf16.msra.mxu0 %v719
        %926 = vmatprep.subr.bf16.mxu0 %v722
        %927 = vmatpush1.bf16.msra.mxu0 %v721
        %928 = vmatprep.subr.bf16.mxu0 %v724
        %929 = vmatpush1.bf16.msra.mxu0 %v723
        %930 = vmatprep.mubr.bf16.mxu0 %v897
        %931 = vmatmul.mubr.bf16.gmra.mrb[0].mxu0 %v896
        %v932 = vpop.f32.mrb[0].mxu0
        %v933 = vadd.f32 0.0, %v932
        %v934 = vpop.f32.mrb[0].mxu0
        %v935 = vadd.f32 0.0, %v934
        %v936 = vpop.f32.mrb[0].mxu0
        %v937 = vadd.f32 0.0, %v936
        %v938 = vpop.f32.mrb[0].mxu0
        %v939 = vadd.f32 0.0, %v938
        %940 = vdwg.mxu0
        %v941 = vadd.f32 %v498, %v933
        %v942 = vadd.f32 %v500, %v935
        %v943 = vadd.f32 %v502, %v937
        %v944 = vadd.f32 %v504, %v939
        %v945 = vtanh.pop %v941
        %v946 = vtanh.pop %v942
        %v947 = vtanh.pop %v943
        %v948 = vtanh.pop %v944
        %s949 = sadd.s32 %s590, 2
        %v950 = vstv %s949
        %vm951 = vcmp.lt.s32.totalorder %v950, %v556
        %vm952 = vcmp.lt.s32.totalorder %v950, %v557
        %v953 = vsel %vm951, 1, 0
        %v954 = vsel %vm952, 1, 0
        %955 = vset.pattern.permute.xlu0 0
        %956 = vperm.xlu0 %955, %v953
        %v957 = vpop.permute.xlu0 %956
        %958 = vset.pattern.permute.xlu0 0
        %959 = vperm.xlu0 %958, %v954
        %v960 = vpop.permute.xlu0 %959
        %vm961 = vcmp.eq.s32.totalorder %v957, 1
        %vm962 = vcmp.eq.s32.totalorder %v960, 1
        %v963 = vsel %vm961, %v945, %v892
        %v964 = vsel %vm961, %v946, %v893
        %v965 = vsel %vm962, %v947, %v894
        %v966 = vsel %vm962, %v948, %v895
        %v967 = vpack.c.bf16 %v965, %v963
        %v968 = vpack.c.bf16 %v966, %v964
        %969 = vmatprep.subr.bf16.mxu0 %v694
        %970 = vmatpush1.bf16.msra.mxu0 %v693
        %971 = vmatprep.subr.bf16.mxu0 %v696
        %972 = vmatpush1.bf16.msra.mxu0 %v695
        %973 = vmatprep.subr.bf16.mxu0 %v698
        %974 = vmatpush1.bf16.msra.mxu0 %v697
        %975 = vmatprep.subr.bf16.mxu0 %v700
        %976 = vmatpush1.bf16.msra.mxu0 %v699
        %977 = vmatprep.subr.bf16.mxu0 %v702
        %978 = vmatpush1.bf16.msra.mxu0 %v701
        %979 = vmatprep.subr.bf16.mxu0 %v704
        %980 = vmatpush1.bf16.msra.mxu0 %v703
        %981 = vmatprep.subr.bf16.mxu0 %v706
        %982 = vmatpush1.bf16.msra.mxu0 %v705
        %983 = vmatprep.subr.bf16.mxu0 %v708
        %984 = vmatpush1.bf16.msra.mxu0 %v707
        %985 = vmatprep.subr.bf16.mxu0 %v710
        %986 = vmatpush1.bf16.msra.mxu0 %v709
        %987 = vmatprep.subr.bf16.mxu0 %v712
        %988 = vmatpush1.bf16.msra.mxu0 %v711
        %989 = vmatprep.subr.bf16.mxu0 %v714
        %990 = vmatpush1.bf16.msra.mxu0 %v713
        %991 = vmatprep.subr.bf16.mxu0 %v716
        %992 = vmatpush1.bf16.msra.mxu0 %v715
        %993 = vmatprep.subr.bf16.mxu0 %v718
        %994 = vmatpush1.bf16.msra.mxu0 %v717
        %995 = vmatprep.subr.bf16.mxu0 %v720
        %996 = vmatpush1.bf16.msra.mxu0 %v719
        %997 = vmatprep.subr.bf16.mxu0 %v722
        %998 = vmatpush1.bf16.msra.mxu0 %v721
        %999 = vmatprep.subr.bf16.mxu0 %v724
        %1000 = vmatpush1.bf16.msra.mxu0 %v723
        %1001 = vmatprep.mubr.bf16.mxu0 %v968
        %1002 = vmatmul.mubr.bf16.gmra.mrb[0].mxu0 %v967
        %v1003 = vpop.f32.mrb[0].mxu0
        %v1004 = vadd.f32 0.0, %v1003
        %v1005 = vpop.f32.mrb[0].mxu0
        %v1006 = vadd.f32 0.0, %v1005
        %v1007 = vpop.f32.mrb[0].mxu0
        %v1008 = vadd.f32 0.0, %v1007
        %v1009 = vpop.f32.mrb[0].mxu0
        %v1010 = vadd.f32 0.0, %v1009
        %1011 = vdwg.mxu0
        %v1012 = vadd.f32 %v508, %v1004
        %v1013 = vadd.f32 %v510, %v1006
        %v1014 = vadd.f32 %v512, %v1008
        %v1015 = vadd.f32 %v514, %v1010
        %v1016 = vtanh.pop %v1012
        %v1017 = vtanh.pop %v1013
        %v1018 = vtanh.pop %v1014
        %v1019 = vtanh.pop %v1015
        %s1020 = sadd.s32 %s590, 3
        %v1021 = vstv %s1020
        %vm1022 = vcmp.lt.s32.totalorder %v1021, %v556
        %vm1023 = vcmp.lt.s32.totalorder %v1021, %v557
        %v1024 = vsel %vm1022, 1, 0
        %v1025 = vsel %vm1023, 1, 0
        %1026 = vset.pattern.permute.xlu0 0
        %1027 = vperm.xlu0 %1026, %v1024
        %v1028 = vpop.permute.xlu0 %1027
        %1029 = vset.pattern.permute.xlu0 0
        %1030 = vperm.xlu0 %1029, %v1025
        %v1031 = vpop.permute.xlu0 %1030
        %vm1032 = vcmp.eq.s32.totalorder %v1028, 1
        %vm1033 = vcmp.eq.s32.totalorder %v1031, 1
        %v1034 = vsel %vm1032, %v1016, %v963
        %v1035 = vsel %vm1032, %v1017, %v964
        %v1036 = vsel %vm1033, %v1018, %v965
        %v1037 = vsel %vm1033, %v1019, %v966
        %v1038 = vpack.c.bf16 %v1036, %v1034
        %v1039 = vpack.c.bf16 %v1037, %v1035
        %1040 = vmatprep.subr.bf16.mxu0 %v694
        %1041 = vmatpush1.bf16.msra.mxu0 %v693
        %1042 = vmatprep.subr.bf16.mxu0 %v696
        %1043 = vmatpush1.bf16.msra.mxu0 %v695
        %1044 = vmatprep.subr.bf16.mxu0 %v698
        %1045 = vmatpush1.bf16.msra.mxu0 %v697
        %1046 = vmatprep.subr.bf16.mxu0 %v700
        %1047 = vmatpush1.bf16.msra.mxu0 %v699
        %1048 = vmatprep.subr.bf16.mxu0 %v702
        %1049 = vmatpush1.bf16.msra.mxu0 %v701
        %1050 = vmatprep.subr.bf16.mxu0 %v704
        %1051 = vmatpush1.bf16.msra.mxu0 %v703
        %1052 = vmatprep.subr.bf16.mxu0 %v706
        %1053 = vmatpush1.bf16.msra.mxu0 %v705
        %1054 = vmatprep.subr.bf16.mxu0 %v708
        %1055 = vmatpush1.bf16.msra.mxu0 %v707
        %1056 = vmatprep.subr.bf16.mxu0 %v710
        %1057 = vmatpush1.bf16.msra.mxu0 %v709
        %1058 = vmatprep.subr.bf16.mxu0 %v712
        %1059 = vmatpush1.bf16.msra.mxu0 %v711
        %1060 = vmatprep.subr.bf16.mxu0 %v714
        %1061 = vmatpush1.bf16.msra.mxu0 %v713
        %1062 = vmatprep.subr.bf16.mxu0 %v716
        %1063 = vmatpush1.bf16.msra.mxu0 %v715
        %1064 = vmatprep.subr.bf16.mxu0 %v718
        %1065 = vmatpush1.bf16.msra.mxu0 %v717
        %1066 = vmatprep.subr.bf16.mxu0 %v720
        %1067 = vmatpush1.bf16.msra.mxu0 %v719
        %1068 = vmatprep.subr.bf16.mxu0 %v722
        %1069 = vmatpush1.bf16.msra.mxu0 %v721
        %1070 = vmatprep.subr.bf16.mxu0 %v724
        %1071 = vmatpush1.bf16.msra.mxu0 %v723
        %1072 = vmatprep.mubr.bf16.mxu0 %v1039
        %1073 = vmatmul.mubr.bf16.gmra.mrb[0].mxu0 %v1038
        %v1074 = vpop.f32.mrb[0].mxu0
        %v1075 = vadd.f32 0.0, %v1074
        %v1076 = vpop.f32.mrb[0].mxu0
        %v1077 = vadd.f32 0.0, %v1076
        %v1078 = vpop.f32.mrb[0].mxu0
        %v1079 = vadd.f32 0.0, %v1078
        %v1080 = vpop.f32.mrb[0].mxu0
        %v1081 = vadd.f32 0.0, %v1080
        %1082 = vdwg.mxu0
        %v1083 = vadd.f32 %v518, %v1075
        %v1084 = vadd.f32 %v520, %v1077
        %v1085 = vadd.f32 %v522, %v1079
        %v1086 = vadd.f32 %v524, %v1081
        %v1087 = vtanh.pop %v1083
        %v1088 = vtanh.pop %v1084
        %v1089 = vtanh.pop %v1085
        %v1090 = vtanh.pop %v1086
        %s1091 = sadd.s32 %s590, 4
        %v1092 = vstv %s1091
        %vm1093 = vcmp.lt.s32.totalorder %v1092, %v556
        %vm1094 = vcmp.lt.s32.totalorder %v1092, %v557
        %v1095 = vsel %vm1093, 1, 0
        %v1096 = vsel %vm1094, 1, 0
        %1097 = vset.pattern.permute.xlu0 0
        %1098 = vperm.xlu0 %1097, %v1095
        %v1099 = vpop.permute.xlu0 %1098
        %1100 = vset.pattern.permute.xlu0 0
        %1101 = vperm.xlu0 %1100, %v1096
        %v1102 = vpop.permute.xlu0 %1101
        %vm1103 = vcmp.eq.s32.totalorder %v1099, 1
        %vm1104 = vcmp.eq.s32.totalorder %v1102, 1
        %v1105 = vsel %vm1103, %v1087, %v1034
        %v1106 = vsel %vm1103, %v1088, %v1035
        %v1107 = vsel %vm1104, %v1089, %v1036
        %v1108 = vsel %vm1104, %v1090, %v1037
        %v1109 = vpack.c.bf16 %v1107, %v1105
        %v1110 = vpack.c.bf16 %v1108, %v1106
        %1111 = vmatprep.subr.bf16.mxu0 %v694
        %1112 = vmatpush1.bf16.msra.mxu0 %v693
        %1113 = vmatprep.subr.bf16.mxu0 %v696
        %1114 = vmatpush1.bf16.msra.mxu0 %v695
        %1115 = vmatprep.subr.bf16.mxu0 %v698
        %1116 = vmatpush1.bf16.msra.mxu0 %v697
        %1117 = vmatprep.subr.bf16.mxu0 %v700
        %1118 = vmatpush1.bf16.msra.mxu0 %v699
        %1119 = vmatprep.subr.bf16.mxu0 %v702
        %1120 = vmatpush1.bf16.msra.mxu0 %v701
        %1121 = vmatprep.subr.bf16.mxu0 %v704
        %1122 = vmatpush1.bf16.msra.mxu0 %v703
        %1123 = vmatprep.subr.bf16.mxu0 %v706
        %1124 = vmatpush1.bf16.msra.mxu0 %v705
        %1125 = vmatprep.subr.bf16.mxu0 %v708
        %1126 = vmatpush1.bf16.msra.mxu0 %v707
        %1127 = vmatprep.subr.bf16.mxu0 %v710
        %1128 = vmatpush1.bf16.msra.mxu0 %v709
        %1129 = vmatprep.subr.bf16.mxu0 %v712
        %1130 = vmatpush1.bf16.msra.mxu0 %v711
        %1131 = vmatprep.subr.bf16.mxu0 %v714
        %1132 = vmatpush1.bf16.msra.mxu0 %v713
        %1133 = vmatprep.subr.bf16.mxu0 %v716
        %1134 = vmatpush1.bf16.msra.mxu0 %v715
        %1135 = vmatprep.subr.bf16.mxu0 %v718
        %1136 = vmatpush1.bf16.msra.mxu0 %v717
        %1137 = vmatprep.subr.bf16.mxu0 %v720
        %1138 = vmatpush1.bf16.msra.mxu0 %v719
        %1139 = vmatprep.subr.bf16.mxu0 %v722
        %1140 = vmatpush1.bf16.msra.mxu0 %v721
        %1141 = vmatprep.subr.bf16.mxu0 %v724
        %1142 = vmatpush1.bf16.msra.mxu0 %v723
        %1143 = vmatprep.mubr.bf16.mxu0 %v1110
        %1144 = vmatmul.mubr.bf16.gmra.mrb[0].mxu0 %v1109
        %v1145 = vpop.f32.mrb[0].mxu0
        %v1146 = vadd.f32 0.0, %v1145
        %v1147 = vpop.f32.mrb[0].mxu0
        %v1148 = vadd.f32 0.0, %v1147
        %v1149 = vpop.f32.mrb[0].mxu0
        %v1150 = vadd.f32 0.0, %v1149
        %v1151 = vpop.f32.mrb[0].mxu0
        %v1152 = vadd.f32 0.0, %v1151
        %1153 = vdwg.mxu0
        %v1154 = vadd.f32 %v528, %v1146
        %v1155 = vadd.f32 %v530, %v1148
        %v1156 = vadd.f32 %v532, %v1150
        %v1157 = vadd.f32 %v534, %v1152
        %v1158 = vtanh.pop %v1154
        %v1159 = vtanh.pop %v1155
        %v1160 = vtanh.pop %v1156
        %v1161 = vtanh.pop %v1157
        %s1162 = sadd.s32 %s590, 5
        %v1163 = vstv %s1162
        %vm1164 = vcmp.lt.s32.totalorder %v1163, %v556
        %vm1165 = vcmp.lt.s32.totalorder %v1163, %v557
        %v1166 = vsel %vm1164, 1, 0
        %v1167 = vsel %vm1165, 1, 0
        %1168 = vset.pattern.permute.xlu0 0
        %1169 = vperm.xlu0 %1168, %v1166
        %v1170 = vpop.permute.xlu0 %1169
        %1171 = vset.pattern.permute.xlu0 0
        %1172 = vperm.xlu0 %1171, %v1167
        %v1173 = vpop.permute.xlu0 %1172
        %vm1174 = vcmp.eq.s32.totalorder %v1170, 1
        %vm1175 = vcmp.eq.s32.totalorder %v1173, 1
        %v1176 = vsel %vm1174, %v1158, %v1105
        %v1177 = vsel %vm1174, %v1159, %v1106
        %v1178 = vsel %vm1175, %v1160, %v1107
        %v1179 = vsel %vm1175, %v1161, %v1108
        %v1180 = vpack.c.bf16 %v1178, %v1176
        %v1181 = vpack.c.bf16 %v1179, %v1177
        %1182 = vmatprep.subr.bf16.mxu0 %v694
        %1183 = vmatpush1.bf16.msra.mxu0 %v693
        %1184 = vmatprep.subr.bf16.mxu0 %v696
        %1185 = vmatpush1.bf16.msra.mxu0 %v695
        %1186 = vmatprep.subr.bf16.mxu0 %v698
        %1187 = vmatpush1.bf16.msra.mxu0 %v697
        %1188 = vmatprep.subr.bf16.mxu0 %v700
        %1189 = vmatpush1.bf16.msra.mxu0 %v699
        %1190 = vmatprep.subr.bf16.mxu0 %v702
        %1191 = vmatpush1.bf16.msra.mxu0 %v701
        %1192 = vmatprep.subr.bf16.mxu0 %v704
        %1193 = vmatpush1.bf16.msra.mxu0 %v703
        %1194 = vmatprep.subr.bf16.mxu0 %v706
        %1195 = vmatpush1.bf16.msra.mxu0 %v705
        %1196 = vmatprep.subr.bf16.mxu0 %v708
        %1197 = vmatpush1.bf16.msra.mxu0 %v707
        %1198 = vmatprep.subr.bf16.mxu0 %v710
        %1199 = vmatpush1.bf16.msra.mxu0 %v709
        %1200 = vmatprep.subr.bf16.mxu0 %v712
        %1201 = vmatpush1.bf16.msra.mxu0 %v711
        %1202 = vmatprep.subr.bf16.mxu0 %v714
        %1203 = vmatpush1.bf16.msra.mxu0 %v713
        %1204 = vmatprep.subr.bf16.mxu0 %v716
        %1205 = vmatpush1.bf16.msra.mxu0 %v715
        %1206 = vmatprep.subr.bf16.mxu0 %v718
        %1207 = vmatpush1.bf16.msra.mxu0 %v717
        %1208 = vmatprep.subr.bf16.mxu0 %v720
        %1209 = vmatpush1.bf16.msra.mxu0 %v719
        %1210 = vmatprep.subr.bf16.mxu0 %v722
        %1211 = vmatpush1.bf16.msra.mxu0 %v721
        %1212 = vmatprep.subr.bf16.mxu0 %v724
        %1213 = vmatpush1.bf16.msra.mxu0 %v723
        %1214 = vmatprep.mubr.bf16.mxu0 %v1181
        %1215 = vmatmul.mubr.bf16.gmra.mrb[0].mxu0 %v1180
        %v1216 = vpop.f32.mrb[0].mxu0
        %v1217 = vadd.f32 0.0, %v1216
        %v1218 = vpop.f32.mrb[0].mxu0
        %v1219 = vadd.f32 0.0, %v1218
        %v1220 = vpop.f32.mrb[0].mxu0
        %v1221 = vadd.f32 0.0, %v1220
        %v1222 = vpop.f32.mrb[0].mxu0
        %v1223 = vadd.f32 0.0, %v1222
        %1224 = vdwg.mxu0
        %v1225 = vadd.f32 %v538, %v1217
        %v1226 = vadd.f32 %v540, %v1219
        %v1227 = vadd.f32 %v542, %v1221
        %v1228 = vadd.f32 %v544, %v1223
        %v1229 = vtanh.pop %v1225
        %v1230 = vtanh.pop %v1226
        %v1231 = vtanh.pop %v1227
        %v1232 = vtanh.pop %v1228
        %s1233 = sadd.s32 %s590, 6
        %v1234 = vstv %s1233
        %vm1235 = vcmp.lt.s32.totalorder %v1234, %v556
        %vm1236 = vcmp.lt.s32.totalorder %v1234, %v557
        %v1237 = vsel %vm1235, 1, 0
        %v1238 = vsel %vm1236, 1, 0
        %1239 = vset.pattern.permute.xlu0 0
        %1240 = vperm.xlu0 %1239, %v1237
        %v1241 = vpop.permute.xlu0 %1240
        %1242 = vset.pattern.permute.xlu0 0
        %1243 = vperm.xlu0 %1242, %v1238
        %v1244 = vpop.permute.xlu0 %1243
        %vm1245 = vcmp.eq.s32.totalorder %v1241, 1
        %vm1246 = vcmp.eq.s32.totalorder %v1244, 1
        %v1247 = vsel %vm1245, %v1229, %v1176
        %v1248 = vsel %vm1245, %v1230, %v1177
        %v1249 = vsel %vm1246, %v1231, %v1178
        %v1250 = vsel %vm1246, %v1232, %v1179
        %v1251 = vpack.c.bf16 %v1249, %v1247
        %v1252 = vpack.c.bf16 %v1250, %v1248
        %1253 = vmatprep.subr.bf16.mxu0 %v694
        %1254 = vmatpush1.bf16.msra.mxu0 %v693
        %1255 = vmatprep.subr.bf16.mxu0 %v696
        %1256 = vmatpush1.bf16.msra.mxu0 %v695
        %1257 = vmatprep.subr.bf16.mxu0 %v698
        %1258 = vmatpush1.bf16.msra.mxu0 %v697
        %1259 = vmatprep.subr.bf16.mxu0 %v700
        %1260 = vmatpush1.bf16.msra.mxu0 %v699
        %1261 = vmatprep.subr.bf16.mxu0 %v702
        %1262 = vmatpush1.bf16.msra.mxu0 %v701
        %1263 = vmatprep.subr.bf16.mxu0 %v704
        %1264 = vmatpush1.bf16.msra.mxu0 %v703
        %1265 = vmatprep.subr.bf16.mxu0 %v706
        %1266 = vmatpush1.bf16.msra.mxu0 %v705
        %1267 = vmatprep.subr.bf16.mxu0 %v708
        %1268 = vmatpush1.bf16.msra.mxu0 %v707
        %1269 = vmatprep.subr.bf16.mxu0 %v710
        %1270 = vmatpush1.bf16.msra.mxu0 %v709
        %1271 = vmatprep.subr.bf16.mxu0 %v712
        %1272 = vmatpush1.bf16.msra.mxu0 %v711
        %1273 = vmatprep.subr.bf16.mxu0 %v714
        %1274 = vmatpush1.bf16.msra.mxu0 %v713
        %1275 = vmatprep.subr.bf16.mxu0 %v716
        %1276 = vmatpush1.bf16.msra.mxu0 %v715
        %1277 = vmatprep.subr.bf16.mxu0 %v718
        %1278 = vmatpush1.bf16.msra.mxu0 %v717
        %1279 = vmatprep.subr.bf16.mxu0 %v720
        %1280 = vmatpush1.bf16.msra.mxu0 %v719
        %1281 = vmatprep.subr.bf16.mxu0 %v722
        %1282 = vmatpush1.bf16.msra.mxu0 %v721
        %1283 = vmatprep.subr.bf16.mxu0 %v724
        %1284 = vmatpush1.bf16.msra.mxu0 %v723
        %1285 = vmatprep.mubr.bf16.mxu0 %v1252
        %1286 = vmatmul.mubr.bf16.gmra.mrb[0].mxu0 %v1251
        %v1287 = vpop.f32.mrb[0].mxu0
        %v1288 = vadd.f32 0.0, %v1287
        %v1289 = vpop.f32.mrb[0].mxu0
        %v1290 = vadd.f32 0.0, %v1289
        %v1291 = vpop.f32.mrb[0].mxu0
        %v1292 = vadd.f32 0.0, %v1291
        %v1293 = vpop.f32.mrb[0].mxu0
        %v1294 = vadd.f32 0.0, %v1293
        %1295 = vdwg.mxu0
        %v1296 = vadd.f32 %v548, %v1288
        %v1297 = vadd.f32 %v550, %v1290
        %v1298 = vadd.f32 %v552, %v1292
        %v1299 = vadd.f32 %v554, %v1294
        %v1300 = vtanh.pop %v1296
        %v1301 = vtanh.pop %v1297
        %v1302 = vtanh.pop %v1298
        %v1303 = vtanh.pop %v1299
        %s1304 = sadd.s32 %s590, 7
        %v1305 = vstv %s1304
        %vm1306 = vcmp.lt.s32.totalorder %v1305, %v556
        %vm1307 = vcmp.lt.s32.totalorder %v1305, %v557
        %v1308 = vsel %vm1306, 1, 0
        %v1309 = vsel %vm1307, 1, 0
        %1310 = vset.pattern.permute.xlu0 0
        %1311 = vperm.xlu0 %1310, %v1308
        %v1312 = vpop.permute.xlu0 %1311
        %1313 = vset.pattern.permute.xlu0 0
        %1314 = vperm.xlu0 %1313, %v1309
        %v1315 = vpop.permute.xlu0 %1314
        %vm1316 = vcmp.eq.s32.totalorder %v1312, 1
        %vm1317 = vcmp.eq.s32.totalorder %v1315, 1
        %v1318 = vsel %vm1316, %v1300, %v1247
        %v1319 = vsel %vm1316, %v1301, %v1248
        %v1320 = vsel %vm1317, %v1302, %v1249
        %v1321 = vsel %vm1317, %v1303, %v1250
        %1322 = vst [vmem:[#allocation2] sm:$0xff] %v1318
        %1323 = vst [vmem:[#allocation2 + $0x8] sm:$0xff] %v1319
        %1324 = vst [vmem:[#allocation2 + $0x10] sm:$0xff] %v1320
        %1325 = vst [vmem:[#allocation2 + $0x18] sm:$0xff] %v1321
        %p1326 = scmp.eq.s32.totalorder %s21, 1
        // Predicated region
        $region57: #{tpu_custom_call.1} parent=39 // pred_check
          %p1327 = pneg %p1326
        $region58: #{tpu_custom_call.1} parent=39 // pred_check_branch
          %1329 = sbr.rel (%p1327) target = $region60
        $region59: #{tpu_custom_call.1} parent=39 // pred_region
          %v1330 = vld [vmem:[#allocation2] sm:$0xff]
          %v1331 = vld [vmem:[#allocation2 + $0x8] sm:$0xff]
          %v1332 = vld [vmem:[#allocation2 + $0x10] sm:$0xff]
          %v1333 = vld [vmem:[#allocation2 + $0x18] sm:$0xff]
          %1334 = vst [vmem:[#allocation9] sm:$0xff] %v1330
          %1335 = vst [vmem:[#allocation9 + $0x8] sm:$0xff] %v1331
          %1336 = vst [vmem:[#allocation9 + $0x10] sm:$0xff] %v1332
          %1337 = vst [vmem:[#allocation9 + $0x18] sm:$0xff] %v1333
        $region60: #{tpu_custom_call.1} parent=39 // pred_fallthru
          _
        // Predicated region
        $region61: #{tpu_custom_call.1} parent=39 // pred_check
          %p1338 = pneg %p144
        $region62: #{tpu_custom_call.1} parent=39 // pred_check_branch
          %1340 = sbr.rel (%p1338) target = $region64
        $region63: #{tpu_custom_call.1} parent=39 // pred_region
          %s1342 = ssub.s32 512, 512
          %1343 = vsyncadd [#allocation5], %s1342
          %s1344 = sshll.u32 [#allocation9], 4
          %s1345 = int_to_ptr.vmem [resolvable:$true] %s1344
          %1350 = dma.vmem_to_hbm [thread:$0]  %s1345, 512, %s5, [#allocation5], 256, 256, 16
        $region64: #{tpu_custom_call.1} parent=39 // pred_fallthru
          _
        // Predicated region
        $region65: #{tpu_custom_call.1} parent=39 // pred_check
          %p1351 = pneg %p144
        $region66: #{tpu_custom_call.1} parent=39 // pred_check_branch
          %1353 = sbr.rel (%p1351) target = $region68
        $region67: #{tpu_custom_call.1} parent=39 // pred_region
          %1354 = dma.done [#allocation5], 512
        $region68: #{tpu_custom_call.1} parent=39 // pred_fallthru
          _
      $region40: #{tpu_custom_call.1} parent=5 // pred_fallthru
        _
      %p1355 = scmp.le.s32.totalorder 2, %s16
      // Predicated region
      $region69: #{tpu_custom_call.1} parent=5 // pred_check
        %p1356 = pneg %p1355
      $region70: #{tpu_custom_call.1} parent=5 // pred_check_branch
        %1358 = sbr.rel (%p1356) target = $region72
      $region71: #{tpu_custom_call.1} parent=5 // pred_region
        %s1359 = ssub.s32 %s16, 2
      $region72: #{tpu_custom_call.1} parent=5 // pred_fallthru
        _
    $region6: #{tpu_custom_call.1} parent=1 // loop_footer
      %s20 = sadd.s32 1, %s16
    $region7: #{tpu_custom_call.1} parent=1 // loop_footer_branch
      %15 = sbr.rel target = $region3
    $region8: #{tpu_custom_call.1} parent=1 // loop_exit
      _
    %1360 = vsyncpa [#allocation4], 1
    %s1361 = scalar_lea.sflag [#allocation4], 1
    %1362 = vsyncpa %s1361, 1
    %1363 = vsyncpa [#allocation7], 1
    %1364 = vsyncpa [#allocation5], 1
    %s1365 = scalar_lea.sflag [#allocation5], 1
    %1366 = vsyncpa %s1365, 1

</llo_original>
